<compile_context>
chip_gen: v5e
topology: v5e:2x2
jax: 0.10.0
libtpu: 0.0.40
codegen_flags: <defaults>
</compile_context>

<pallas_src>
import jax
import jax.numpy as jnp
from jax.experimental import pallas as pl
from jax.experimental.pallas import tpu as pltpu


def _round_up(n, m):
    return ((n + m - 1) // m) * m


# ---------------------------------------------------------------------------
# kernels
# ---------------------------------------------------------------------------
def _route_body(x_ref, w_ref, b_ref, x0_ref, x1_ref, out_ref):
    x = x_ref[...]                                         # (TN, D), storage dtype

    # gate: Linear(D, P) with f32 params + f32 accumulation.
    # sigmoid(z) > 0.5  <=>  z > 0  -> compare logits directly, no EUP op.
    logits = jnp.dot(x.astype(jnp.float32), w_ref[...],
                     preferred_element_type=jnp.float32) + b_ref[...]   # (TN, P)

    m0 = logits[:, 0:1] > 0.0                              # (TN, 1)
    m1 = logits[:, 1:2] > 0.0

    zero = jnp.zeros((), x.dtype)
    x0 = jnp.where(m0, x, zero)                            # dispatch path 0 + Identity expert
    x1 = jnp.where(m1, x, zero)                            # dispatch path 1 + Identity expert

    x0_ref[...] = x0
    x1_ref[...] = x1
    if out_ref is not None:
        # gather/combine: scatter-add back to original positions
        out_ref[...] = x0 + x1


def _route_kernel_combined(x_ref, w_ref, b_ref, x0_ref, x1_ref, out_ref):
    _route_body(x_ref, w_ref, b_ref, x0_ref, x1_ref, out_ref)


def _route_kernel_nocombine(x_ref, w_ref, b_ref, x0_ref, x1_ref):
    _route_body(x_ref, w_ref, b_ref, x0_ref, x1_ref, None)


def _score_kernel(x_ref, w_ref, b_ref, s_ref):
    logits = jnp.dot(x_ref[...].astype(jnp.float32), w_ref[...],
                     preferred_element_type=jnp.float32) + b_ref[...]
    s_ref[...] = jax.nn.sigmoid(logits)                    # (TN, P) scores


# ---------------------------------------------------------------------------
# tiling / wrapper
# ---------------------------------------------------------------------------
_VMEM_TILE_BUDGET = 16 << 20   # fits v5e's default scoped VMEM; << v7x's 64 MiB


def _choose_tile_rows(N, D, itemsize, n_out, block_rows):
    # Per-row double-buffered VMEM bytes for the pipelined tiles.
    per_row = (1 + n_out) * 2 * D * itemsize
    cap_vmem = max(8, (_VMEM_TILE_BUDGET // per_row) // 8 * 8)
    # >= 2 grid steps so the "parallel" axis can shard across v7x's two TCs.
    cap_split = _round_up(pl.cdiv(N, 2), 8)
    tn = min(block_rows, cap_vmem, cap_split, _round_up(N, 8))
    return max(8, tn)


def _compiler_params(tn, D, itemsize, n_out):
    footprint = (1 + n_out) * 2 * tn * D * itemsize + (1 << 20)
    vmem_limit = min(48 << 20, max(16 << 20, int(footprint * 5 // 4)))
    return pltpu.CompilerParams(
        dimension_semantics=("parallel",),
        vmem_limit_bytes=vmem_limit,
    )


def _gate_params(w, b):
    # Gate params stay f32: D x P is negligible VMEM/DMA, and f32 avoids
    # routing flips near the 0.5 threshold in a bf16 data path.
    P = w.shape[-1]
    return w.astype(jnp.float32), jnp.reshape(b, (1, P)).astype(jnp.float32)


def branch_route(x, w, b, *, block_rows=512, combined=True):
    """BranchRoute forward. Returns (x0, x1, out) (or (x0, x1) if combined=False)."""
    N, D = x.shape
    dt = x.dtype
    w, b = _gate_params(w, b)
    P = w.shape[-1]

    n_out = 3 if combined else 2
    itemsize = jnp.dtype(dt).itemsize
    tn = _choose_tile_rows(N, D, itemsize, n_out, block_rows)
    grid = (pl.cdiv(N, tn),)                               # edge block handles ragged N

    row_spec = pl.BlockSpec((tn, D), lambda i: (i, 0))     # tiled over N
    w_spec = pl.BlockSpec((D, P), lambda i: (0, 0))        # resident constant
    b_spec = pl.BlockSpec((1, P), lambda i: (0, 0))        # resident constant

    kernel = _route_kernel_combined if combined else _route_kernel_nocombine
    out_sd = jax.ShapeDtypeStruct((N, D), dt)

    return pl.pallas_call(
        kernel,
        out_shape=(out_sd,) * n_out,
        grid_spec=pltpu.PrefetchScalarGridSpec(
            num_scalar_prefetch=0,
            grid=grid,
            in_specs=[row_spec, w_spec, b_spec],
            out_specs=(row_spec,) * n_out,
        ),
        compiler_params=_compiler_params(tn, D, itemsize, n_out),
    )(x, w, b)


def branch_route_scores(x, w, b, *, block_rows=512):
    """Gate-only variant: returns the (N, P) sigmoid scores (~1R of x, tiny W)."""
    N, D = x.shape
    w, b = _gate_params(w, b)
    P = w.shape[-1]

    itemsize = jnp.dtype(x.dtype).itemsize
    tn = _choose_tile_rows(N, D, itemsize, 1, block_rows)
    grid = (pl.cdiv(N, tn),)

    return pl.pallas_call(
        _score_kernel,
        out_shape=jax.ShapeDtypeStruct((N, P), jnp.float32),
        grid_spec=pltpu.PrefetchScalarGridSpec(
            num_scalar_prefetch=0,
            grid=grid,
            in_specs=[pl.BlockSpec((tn, D), lambda i: (i, 0)),
                      pl.BlockSpec((D, P), lambda i: (0, 0)),
                      pl.BlockSpec((1, P), lambda i: (0, 0))],
            out_specs=pl.BlockSpec((tn, P), lambda i: (i, 0)),
        ),
        compiler_params=_compiler_params(tn, D, itemsize, 1),
    )(x, w, b)


# ---------------------------------------------------------------------------
# pure-JAX reference (f32 gate, sigmoid > 0.5 protocol)
# ---------------------------------------------------------------------------
def branch_route_ref(x, w, b):
    xf = x.astype(jnp.float32)
    score = jax.nn.sigmoid(
        xf @ w.astype(jnp.float32) + jnp.reshape(b, (1, -1)).astype(jnp.float32))
    m0 = score[:, 0:1] > 0.5
    m1 = score[:, 1:2] > 0.5
    x0 = jnp.where(m0, x, jnp.zeros((), x.dtype))
    x1 = jnp.where(m1, x, jnp.zeros((), x.dtype))
    return x0, x1, x0 + x1, score


if __name__ == "__main__":
    N, D, P = 1024, 256, 2   # cells, feature dim, num paths

    key = jax.random.PRNGKey(0)
    kx, kw, kb = jax.random.split(key, 3)
    x = jax.random.normal(kx, (N, D), dtype=jnp.float32)
    # deterministic gate parameters (nn.Linear(D, 2) -> x @ w + b layout)
    w = jax.random.normal(kw, (D, P), dtype=jnp.float32) * 0.3
    b = jax.random.normal(kb, (1, P), dtype=jnp.float32) * 0.1

    r0, r1, rout, rscore = branch_route_ref(x, w, b)

    # f32 run (2 row tiles of 512) vs. pure-JAX reference
    x0, x1, out = branch_route(x, w, b)
    jax.block_until_ready((x0, x1, out))
    assert jnp.allclose(x0, r0, atol=1e-5), "x0 mismatch"
    assert jnp.allclose(x1, r1, atol=1e-5), "x1 mismatch"
    assert jnp.allclose(out, rout, atol=1e-5), "combined output mismatch"

    # ragged N (edge block, no wrapper pad / slice-back copies)
    xr = x[:100]
    s0, s1, sout, _ = branch_route_ref(xr, w, b)
    y0, y1, yout = branch_route(xr, w, b)
    jax.block_until_ready((y0, y1, yout))
    assert jnp.allclose(y0, s0, atol=1e-5) and jnp.allclose(y1, s1, atol=1e-5)
    assert jnp.allclose(yout, sout, atol=1e-5)

    # bf16 storage path (halves HBM bytes); gate stays f32, so routing decisions
    # match the f32-gate reference applied to the bf16 data.
    xb = x.astype(jnp.bfloat16)
    t0, t1, tout, _ = branch_route_ref(xb, w, b)
    b0, b1, bout = branch_route(xb, w, b)
    jax.block_until_ready((b0, b1, bout))
    assert bout.dtype == jnp.bfloat16
    assert jnp.allclose(b0.astype(jnp.float32), t0.astype(jnp.float32))
    assert jnp.allclose(b1.astype(jnp.float32), t1.astype(jnp.float32))
    assert jnp.allclose(bout.astype(jnp.float32), tout.astype(jnp.float32))

    # no-combine variant (1R + 2W) for consumers that fuse x0 + x1 downstream
    c0, c1 = branch_route(x, w, b, combined=False)
    jax.block_until_ready((c0, c1))
    assert jnp.allclose(c0, r0, atol=1e-5) and jnp.allclose(c1, r1, atol=1e-5)

    # scores-only variant (~1R of x + negligible W): masks recovered downstream
    score = branch_route_scores(x, w, b)
    jax.block_until_ready(score)
    assert jnp.allclose(score, rscore, atol=1e-5), "score mismatch"
    x0_from_score = jnp.where(score[:, 0:1] > 0.5, x, jnp.zeros((), x.dtype))
    assert jnp.allclose(x0_from_score, r0, atol=1e-5)

    print("KERNEL_OK")
</pallas_src>

<mosaic_0001>
module attributes {stable_mosaic.version = 11 : i64} {
  func.func @_route_kernel_combined(%arg0: i32, %arg1: memref<512x256xf32, #tpu.memory_space<vmem>>, %arg2: memref<256x2xf32, #tpu.memory_space<vmem>>, %arg3: memref<1x2xf32, #tpu.memory_space<vmem>>, %arg4: memref<512x256xf32, #tpu.memory_space<vmem>>, %arg5: memref<512x256xf32, #tpu.memory_space<vmem>>, %arg6: memref<512x256xf32, #tpu.memory_space<vmem>>) attributes {dimension_semantics = [#tpu.dimension_semantics<parallel>], iteration_bounds = array<i64: 2>, scalar_prefetch = 0 : i64, scratch_operands = 0 : i64, tpu.core_type = #tpu.core_type<tc>, window_params = [{transform_indices = @transform_0, window_bounds = array<i64: 512, 256>}, {pipeline_mode = #tpu.pipeline_mode<synchronous>, transform_indices = @transform_1, window_bounds = array<i64: 256, 2>}, {pipeline_mode = #tpu.pipeline_mode<synchronous>, transform_indices = @transform_2, window_bounds = array<i64: 1, 2>}, {transform_indices = @transform_3, window_bounds = array<i64: 512, 256>}, {transform_indices = @transform_4, window_bounds = array<i64: 512, 256>}, {transform_indices = @transform_5, window_bounds = array<i64: 512, 256>}]} {
    %c0 = arith.constant 0 : index
    %c0_0 = arith.constant 0 : index
    %0 = vector.load %arg1[%c0, %c0_0] : memref<512x256xf32, #tpu.memory_space<vmem>>, vector<512x256xf32>
    %c0_1 = arith.constant 0 : index
    %c0_2 = arith.constant 0 : index
    %1 = vector.load %arg2[%c0_1, %c0_2] : memref<256x2xf32, #tpu.memory_space<vmem>>, vector<256x2xf32>
    %cst = arith.constant dense<0.000000e+00> : vector<512x2xf32>
    %2 = tpu.matmul %0, %1, %cst {dimension_numbers = #tpu.dot_dimension_numbers<[1], [0], [0], [1], [0, 0, 1, 1], [], []>} : vector<512x256xf32>, vector<256x2xf32>, vector<512x2xf32> -> vector<512x2xf32>
    %c0_3 = arith.constant 0 : index
    %c0_4 = arith.constant 0 : index
    %3 = vector.load %arg3[%c0_3, %c0_4] : memref<1x2xf32, #tpu.memory_space<vmem>>, vector<1x2xf32>
    %4 = vector.broadcast %3 : vector<1x2xf32> to vector<512x2xf32>
    %5 = arith.addf %2, %4 : vector<512x2xf32>
    %6 = vector.extract_strided_slice %5 {offsets = [0, 0], sizes = [512, 1], strides = [1, 1]} : vector<512x2xf32> to vector<512x1xf32>
    %cst_5 = arith.constant 0.000000e+00 : f32
    %7 = vector.broadcast %cst_5 : f32 to vector<512x1xf32>
    %8 = arith.cmpf ogt, %6, %7 : vector<512x1xf32>
    %9 = vector.extract_strided_slice %5 {offsets = [0, 1], sizes = [512, 1], strides = [1, 1]} : vector<512x2xf32> to vector<512x1xf32>
    %cst_6 = arith.constant 0.000000e+00 : f32
    %10 = vector.broadcast %cst_6 : f32 to vector<512x1xf32>
    %11 = arith.cmpf ogt, %9, %10 : vector<512x1xf32>
    %cst_7 = arith.constant 0.000000e+00 : f32
    %12 = vector.shape_cast %8 : vector<512x1xi1> to vector<512x1xi1>
    %13 = vector.broadcast %12 : vector<512x1xi1> to vector<512x256xi1>
    %14 = vector.broadcast %cst_7 : f32 to vector<512x256xf32>
    %15 = arith.select %13, %0, %14 : vector<512x256xi1>, vector<512x256xf32>
    %cst_8 = arith.constant 0.000000e+00 : f32
    %16 = vector.shape_cast %11 : vector<512x1xi1> to vector<512x1xi1>
    %17 = vector.broadcast %16 : vector<512x1xi1> to vector<512x256xi1>
    %18 = vector.broadcast %cst_8 : f32 to vector<512x256xf32>
    %19 = arith.select %17, %0, %18 : vector<512x256xi1>, vector<512x256xf32>
    %c0_9 = arith.constant 0 : index
    %c0_10 = arith.constant 0 : index
    %20 = vector.load %arg4[%c0_9, %c0_10] : memref<512x256xf32, #tpu.memory_space<vmem>>, vector<512x256xf32>
    tpu.vector_store %arg4[%c0_9, %c0_10], %15 {strides = array<i32>} : memref<512x256xf32, #tpu.memory_space<vmem>>, vector<512x256xf32>,
    %c0_11 = arith.constant 0 : index
    %c0_12 = arith.constant 0 : index
    %21 = vector.load %arg5[%c0_11, %c0_12] : memref<512x256xf32, #tpu.memory_space<vmem>>, vector<512x256xf32>
    tpu.vector_store %arg5[%c0_11, %c0_12], %19 {strides = array<i32>} : memref<512x256xf32, #tpu.memory_space<vmem>>, vector<512x256xf32>,
    %22 = arith.addf %15, %19 : vector<512x256xf32>
    %c0_13 = arith.constant 0 : index
    %c0_14 = arith.constant 0 : index
    %23 = vector.load %arg6[%c0_13, %c0_14] : memref<512x256xf32, #tpu.memory_space<vmem>>, vector<512x256xf32>
    tpu.vector_store %arg6[%c0_13, %c0_14], %22 {strides = array<i32>} : memref<512x256xf32, #tpu.memory_space<vmem>>, vector<512x256xf32>,
    return
  }
  func.func @transform_0(%arg0: i32) -> (i32, i32) {
    %c0_i32 = arith.constant 0 : i32
    %c0_i32_0 = arith.constant 0 : i32
    return %arg0, %c0_i32 : i32, i32
  }
  func.func @transform_1(%arg0: i32) -> (i32, i32) {
    %c0_i32 = arith.constant 0 : i32
    %c0_i32_0 = arith.constant 0 : i32
    %c0_i32_1 = arith.constant 0 : i32
    return %c0_i32, %c0_i32_0 : i32, i32
  }
  func.func @transform_2(%arg0: i32) -> (i32, i32) {
    %c0_i32 = arith.constant 0 : i32
    %c0_i32_0 = arith.constant 0 : i32
    %c0_i32_1 = arith.constant 0 : i32
    return %c0_i32, %c0_i32_0 : i32, i32
  }
  func.func @transform_3(%arg0: i32) -> (i32, i32) {
    %c0_i32 = arith.constant 0 : i32
    %c0_i32_0 = arith.constant 0 : i32
    return %arg0, %c0_i32 : i32, i32
  }
  func.func @transform_4(%arg0: i32) -> (i32, i32) {
    %c0_i32 = arith.constant 0 : i32
    %c0_i32_0 = arith.constant 0 : i32
    return %arg0, %c0_i32 : i32, i32
  }
  func.func @transform_5(%arg0: i32) -> (i32, i32) {
    %c0_i32 = arith.constant 0 : i32
    %c0_i32_0 = arith.constant 0 : i32
    return %arg0, %c0_i32 : i32, i32
  }
}

</mosaic_0001>

<llo_original>
// kernel: tpu_custom_call.1
$region0: #{tpu_custom_call.1}
  #allocation0 [shape = 'u32[]', space=smem, size = 0x4, offset = 0x4, fixed_abs, tag = 'smem constant byte address 0x4 - core index']
  #allocation1 [shape = 'u32[72,128]{1,0:T(1,128)}', space=vmem, size = 0x9000, scoped, tag = 'internal scratch']
  %s0 = inlined_call_operand.hbm [shape: f32[1024,256], index: 0, kind: input, shape index: {}]
  %s1 = inlined_call_operand.vmem [shape: f32[256,2], index: 1, kind: input, shape index: {}]
  %s2 = inlined_call_operand.vmem [shape: f32[1,2], index: 2, kind: input, shape index: {}]
  %s3 = inlined_call_operand.hbm [shape: f32[1024,256], index: 3, kind: output, shape index: {0}]
  %s4 = inlined_call_operand.hbm [shape: f32[1024,256], index: 4, kind: output, shape index: {1}]
  %s5 = inlined_call_operand.hbm [shape: f32[1024,256], index: 5, kind: output, shape index: {2}]
  %6 = xla_tuple %s3, %s4, %s5
  %s7 = sld [smem:[#allocation0]]
  $region65: #{tpu_custom_call.1} parent=0
    _
  %s9 = ssub.s32 1, %s7
  %s10 = scalar_select 0, %s9, %s7
  $region1: #{tpu_custom_call.1} parent=0
    #allocation2 [shape = 'u8[1048576]{0}', space=vmem, size = 0x100000, scoped, tag = 'input window, operand 0']
    #allocation3 [shape = 's32[2]{0}', space=sflag, size = 0x8, scoped, tag = 'scoped memory for tpu_custom_call.1']
    #allocation4 [shape = 's32[2]{0}', space=sflag, size = 0x8, scoped, tag = 'scoped memory for tpu_custom_call.1']
    #allocation5 [shape = 'u8[1048576]{0}', space=vmem, size = 0x100000, scoped, tag = 'output window, operand 0']
    #allocation6 [shape = 'u8[1048576]{0}', space=vmem, size = 0x100000, scoped, tag = 'output window, operand 1']
    #allocation7 [shape = 's32[2]{0}', space=sflag, size = 0x8, scoped, tag = 'scoped memory for tpu_custom_call.1']
    #allocation8 [shape = 'u8[1048576]{0}', space=vmem, size = 0x100000, scoped, tag = 'output window, operand 2']
    %11 = vsyncpa [#allocation3], 0
    %s12 = scalar_lea.sflag [#allocation3], 1
    %13 = vsyncpa %s12, 0
    %14 = vsyncpa [#allocation4], 0
    %s15 = scalar_lea.sflag [#allocation4], 1
    %16 = vsyncpa %s15, 0
    %17 = vsyncpa [#allocation7], 0
    %s18 = scalar_lea.sflag [#allocation7], 1
    %19 = vsyncpa %s18, 0
    loop: start=0, step=1, limit=4
    $region2: #{tpu_custom_call.1} parent=1 // loop_pre_header
      _
    $region3: #{tpu_custom_call.1} parent=1 // loop_header
      %s21 = sphi 0, %s25
      %p22 = scmp.ge.s32.totalorder %s21, 4
      %s31 = sphi 0, %s33
      %s34 = sphi 0, %s31
      %s35 = sphi 0, %s34
      %s51 = sphi 0, %s35
      %s55 = sphi 0, %s55
      %s57 = sphi 0, %s55
      %s58 = sphi 0, %s57
      %s72 = sphi 0, %s58
      %s76 = sphi 0, %s76
      %s78 = sphi 0, %s76
      %s79 = sphi 0, %s78
      %s93 = sphi 0, %s79
      %s99 = sphi 0, %s101
      %s102 = sphi 0, %s99
      %s103 = sphi 0, %s102
      %s119 = sphi 0, %s103
      %s125 = sphi 0, %s127
      %s128 = sphi 0, %s125
      %s129 = sphi 0, %s128
      %s145 = sphi 0, %s129
      %s151 = sphi 0, %s153
      %s154 = sphi 0, %s151
      %s155 = sphi 0, %s154
      %s171 = sphi 0, %s155
    $region4: #{tpu_custom_call.1} parent=1 // loop_header_branch
      %24 = sbr.rel (%p22) target = $region8
    $region5: #{tpu_custom_call.1} parent=1 // loop_body
      %s26 = ssub.s32 %s21, 1
      %s27 = ssub.s32 %s21, 2
      %s28 = sadd.s32 %s21, 1
      %s29 = ssub.s32 %s21, %s28
      %p30 = scmp.eq.s32.totalorder %s29, 0
      %s32 = sadd.s32 %s31, 1
      %s33 = scalar_select %p30, %s31, %s32
      %p36 = pneg %p30
      %p37 = scmp.eq.s32.totalorder %s21, 1
      %p38 = por %p36, %p37
      %p39 = scmp.ne.s32.totalorder %s31, %s34
      %p40 = scmp.eq.s32.totalorder %s21, 0
      %p41 = por %p39, %p40
      %p42 = scmp.ne.s32.totalorder %s31, %s34
      %p43 = scmp.eq.s32.totalorder %s26, 1
      %p44 = por %p42, %p43
      %p45 = scmp.ne.s32.totalorder %s34, %s35
      %p46 = scmp.eq.s32.totalorder %s26, 0
      %p47 = por %p45, %p46
      %p48 = scmp.ne.s32.totalorder %s34, %s35
      %p49 = scmp.eq.s32.totalorder %s27, 1
      %p50 = por %p48, %p49
      %p52 = scmp.ne.s32.totalorder %s35, %s51
      %p53 = scmp.eq.s32.totalorder %s27, 0
      %p54 = por %p52, %p53
      %s56 = sadd.s32 %s55, 1
      %p59 = scmp.eq.s32.totalorder %s21, 1
      %p60 = scmp.ne.s32.totalorder %s55, %s57
      %p61 = scmp.eq.s32.totalorder %s21, 0
      %p62 = por %p60, %p61
      %p63 = scmp.ne.s32.totalorder %s55, %s57
      %p64 = scmp.eq.s32.totalorder %s26, 1
      %p65 = por %p63, %p64
      %p66 = scmp.ne.s32.totalorder %s57, %s58
      %p67 = scmp.eq.s32.totalorder %s26, 0
      %p68 = por %p66, %p67
      %p69 = scmp.ne.s32.totalorder %s57, %s58
      %p70 = scmp.eq.s32.totalorder %s27, 1
      %p71 = por %p69, %p70
      %p73 = scmp.ne.s32.totalorder %s58, %s72
      %p74 = scmp.eq.s32.totalorder %s27, 0
      %p75 = por %p73, %p74
      %s77 = sadd.s32 %s76, 1
      %p80 = scmp.eq.s32.totalorder %s21, 1
      %p81 = scmp.ne.s32.totalorder %s76, %s78
      %p82 = scmp.eq.s32.totalorder %s21, 0
      %p83 = por %p81, %p82
      %p84 = scmp.ne.s32.totalorder %s76, %s78
      %p85 = scmp.eq.s32.totalorder %s26, 1
      %p86 = por %p84, %p85
      %p87 = scmp.ne.s32.totalorder %s78, %s79
      %p88 = scmp.eq.s32.totalorder %s26, 0
      %p89 = por %p87, %p88
      %p90 = scmp.ne.s32.totalorder %s78, %s79
      %p91 = scmp.eq.s32.totalorder %s27, 1
      %p92 = por %p90, %p91
      %p94 = scmp.ne.s32.totalorder %s79, %s93
      %p95 = scmp.eq.s32.totalorder %s27, 0
      %p96 = por %p94, %p95
      %s97 = ssub.s32 %s21, %s28
      %p98 = scmp.eq.s32.totalorder %s97, 0
      %s100 = sadd.s32 %s99, 1
      %s101 = scalar_select %p98, %s99, %s100
      %p104 = pneg %p98
      %p105 = scmp.eq.s32.totalorder %s21, 1
      %p106 = por %p104, %p105
      %p107 = scmp.ne.s32.totalorder %s99, %s102
      %p108 = scmp.eq.s32.totalorder %s21, 0
      %p109 = por %p107, %p108
      %p110 = scmp.ne.s32.totalorder %s99, %s102
      %p111 = scmp.eq.s32.totalorder %s26, 1
      %p112 = por %p110, %p111
      %p113 = scmp.ne.s32.totalorder %s102, %s103
      %p114 = scmp.eq.s32.totalorder %s26, 0
      %p115 = por %p113, %p114
      %p116 = scmp.ne.s32.totalorder %s102, %s103
      %p117 = scmp.eq.s32.totalorder %s27, 1
      %p118 = por %p116, %p117
      %p120 = scmp.ne.s32.totalorder %s103, %s119
      %p121 = scmp.eq.s32.totalorder %s27, 0
      %p122 = por %p120, %p121
      %s123 = ssub.s32 %s21, %s28
      %p124 = scmp.eq.s32.totalorder %s123, 0
      %s126 = sadd.s32 %s125, 1
      %s127 = scalar_select %p124, %s125, %s126
      %p130 = pneg %p124
      %p131 = scmp.eq.s32.totalorder %s21, 1
      %p132 = por %p130, %p131
      %p133 = scmp.ne.s32.totalorder %s125, %s128
      %p134 = scmp.eq.s32.totalorder %s21, 0
      %p135 = por %p133, %p134
      %p136 = scmp.ne.s32.totalorder %s125, %s128
      %p137 = scmp.eq.s32.totalorder %s26, 1
      %p138 = por %p136, %p137
      %p139 = scmp.ne.s32.totalorder %s128, %s129
      %p140 = scmp.eq.s32.totalorder %s26, 0
      %p141 = por %p139, %p140
      %p142 = scmp.ne.s32.totalorder %s128, %s129
      %p143 = scmp.eq.s32.totalorder %s27, 1
      %p144 = por %p142, %p143
      %p146 = scmp.ne.s32.totalorder %s129, %s145
      %p147 = scmp.eq.s32.totalorder %s27, 0
      %p148 = por %p146, %p147
      %s149 = ssub.s32 %s21, %s28
      %p150 = scmp.eq.s32.totalorder %s149, 0
      %s152 = sadd.s32 %s151, 1
      %s153 = scalar_select %p150, %s151, %s152
      %p156 = pneg %p150
      %p157 = scmp.eq.s32.totalorder %s21, 1
      %p158 = por %p156, %p157
      %p159 = scmp.ne.s32.totalorder %s151, %s154
      %p160 = scmp.eq.s32.totalorder %s21, 0
      %p161 = por %p159, %p160
      %p162 = scmp.ne.s32.totalorder %s151, %s154
      %p163 = scmp.eq.s32.totalorder %s26, 1
      %p164 = por %p162, %p163
      %p165 = scmp.ne.s32.totalorder %s154, %s155
      %p166 = scmp.eq.s32.totalorder %s26, 0
      %p167 = por %p165, %p166
      %p168 = scmp.ne.s32.totalorder %s154, %s155
      %p169 = scmp.eq.s32.totalorder %s27, 1
      %p170 = por %p168, %p169
      %p172 = scmp.ne.s32.totalorder %s155, %s171
      %p173 = scmp.eq.s32.totalorder %s27, 0
      %p174 = por %p172, %p173
      %p175 = scmp.le.s32.totalorder 1, %s21
      %p176 = scmp.lt.s32.totalorder %s21, 3
      %p177 = pnand %p175, %p176
      %p178 = pneg %p177
      // Predicated region
      $region9: #{tpu_custom_call.1} parent=5 // pred_check
        _
      $region10: #{tpu_custom_call.1} parent=5 // pred_check_branch
        %180 = sbr.rel (%p177) target = $region12
      $region11: #{tpu_custom_call.1} parent=5 // pred_region
        %s181 = ssub.s32 %s21, 1
        // Predicated region
        $region13: #{tpu_custom_call.1} parent=11 // pred_check
          %p182 = pneg %p68
        $region14: #{tpu_custom_call.1} parent=11 // pred_check_branch
          %184 = sbr.rel (%p182) target = $region16
        $region15: #{tpu_custom_call.1} parent=11 // pred_region
          _
        $region16: #{tpu_custom_call.1} parent=11 // pred_fallthru
          _
        // Predicated region
        $region17: #{tpu_custom_call.1} parent=11 // pred_check
          %p185 = pneg %p89
        $region18: #{tpu_custom_call.1} parent=11 // pred_check_branch
          %187 = sbr.rel (%p185) target = $region20
        $region19: #{tpu_custom_call.1} parent=11 // pred_region
          _
        $region20: #{tpu_custom_call.1} parent=11 // pred_fallthru
          _
      $region12: #{tpu_custom_call.1} parent=5 // pred_fallthru
        _
      %p188 = scmp.lt.s32.totalorder %s21, 2
      // Predicated region
      $region21: #{tpu_custom_call.1} parent=5 // pred_check
        %p189 = pneg %p188
      $region22: #{tpu_custom_call.1} parent=5 // pred_check_branch
        %191 = sbr.rel (%p189) target = $region24
      $region23: #{tpu_custom_call.1} parent=5 // pred_region
        // Predicated region
        $region25: #{tpu_custom_call.1} parent=23 // pred_check
          %p192 = pneg %p41
        $region26: #{tpu_custom_call.1} parent=23 // pred_check_branch
          %194 = sbr.rel (%p192) target = $region28
        $region27: #{tpu_custom_call.1} parent=23 // pred_region
          %s195 = sand.u32 %s31, 1
          %s196 = scalar_lea.sflag [#allocation3], %s195
          %s197 = sand.u32 %s31, 1
          %s198 = smul.addr %s197, 1024
          %s199 = scalar_lea.vmem [#allocation2], %s198
          %s200 = smul.u32 64, %s21
          %202 = vsyncadd %s196, 0
          %s203 = smul.addr %s200, 2
          %s204 = smul.addr %s203, 8
          %s205 = scalar_lea.hbm %s0, %s204
          %s206 = sshll.u32 %s205, 4
          %s207 = int_to_ptr.hbm [resolvable:$true] %s206
          %s208 = sshll.u32 %s199, 4
          %s209 = int_to_ptr.vmem [resolvable:$true] %s208
          %214 = dma.hbm_to_vmem [thread:$0]  %s207, 16384, %s209, %s196, 256, 256, 16
        $region28: #{tpu_custom_call.1} parent=23 // pred_fallthru
          _
      $region24: #{tpu_custom_call.1} parent=5 // pred_fallthru
        _
      %p215 = scmp.le.s32.totalorder 1, %s21
      %p216 = scmp.lt.s32.totalorder %s21, 3
      %p217 = pnand %p215, %p216
      %p218 = pneg %p217
      // Predicated region
      $region29: #{tpu_custom_call.1} parent=5 // pred_check
        _
      $region30: #{tpu_custom_call.1} parent=5 // pred_check_branch
        %220 = sbr.rel (%p217) target = $region32
      $region31: #{tpu_custom_call.1} parent=5 // pred_region
        %s221 = ssub.s32 %s21, 1
        %s222 = sand.u32 %s34, 1
        %s223 = scalar_lea.sflag [#allocation3], %s222
        %s224 = sand.u32 %s34, 1
        %s225 = smul.addr %s224, 1024
        %s226 = scalar_lea.vmem [#allocation2], %s225
        // Predicated region
        $region33: #{tpu_custom_call.1} parent=31 // pred_check
          %p227 = pneg %p47
        $region34: #{tpu_custom_call.1} parent=31 // pred_check_branch
          %229 = sbr.rel (%p227) target = $region36
        $region35: #{tpu_custom_call.1} parent=31 // pred_region
          %231 = dma.done %s223, 16384
        $region36: #{tpu_custom_call.1} parent=31 // pred_fallthru
          _
        %s232 = sand.u32 %s34, 1
        %s233 = scalar_lea.sflag [#allocation3], %s232
        %s234 = sand.u32 %s34, 1
        %s235 = smul.addr %s234, 1024
        %s236 = scalar_lea.vmem [#allocation2], %s235
        %p237 = pneg %p47
        %p238 = pneg %p44
        %p239 = pneg %p68
        %p240 = pneg %p65
        %p241 = pneg %p89
        %p242 = pneg %p86
        %p243 = pneg %p115
        %p244 = pneg %p112
        %s245 = sand.u32 %s102, 1
        %s246 = scalar_lea.sflag [#allocation4], %s245
        %s247 = sand.u32 %s102, 1
        %s248 = smul.addr %s247, 1024
        %s249 = scalar_lea.vmem [#allocation5], %s248
        %p250 = pneg %p141
        %p251 = pneg %p138
        %s252 = sand.u32 %s26, 1
        %s253 = scalar_lea.sflag [#allocation7], %s252
        %s254 = sand.u32 %s128, 1
        %s255 = smul.addr %s254, 1024
        %s256 = scalar_lea.vmem [#allocation6], %s255
        %p257 = pneg %p167
        %p258 = pneg %p164
        %s259 = sand.u32 %s26, 1
        %s260 = scalar_lea.sflag [#allocation7], %s259
        %s261 = sand.u32 %s154, 1
        %s262 = smul.addr %s261, 1024
        %s263 = scalar_lea.vmem [#allocation8], %s262
        %s264 = smul.u32 64, %s26
        %s265 = smul.u32 64, %s26
        %s266 = smul.u32 64, %s26
        %s267 = smul.u32 64, %s26
        %v268 = vld [vmem:[%s226] sm:$0xff]
        %v269 = vld [vmem:[%s226 + $0x8] sm:$0xff]
        %v270 = vld [vmem:[%s226 + $0x10] sm:$0xff]
        %v271 = vld [vmem:[%s226 + $0x18] sm:$0xff]
        %v272 = vld [vmem:[%s226 + $0x20] sm:$0xff]
        %v273 = vld [vmem:[%s226 + $0x28] sm:$0xff]
        %v274 = vld [vmem:[%s226 + $0x30] sm:$0xff]
        %v275 = vld [vmem:[%s226 + $0x38] sm:$0xff]
        %v276 = vld [vmem:[%s226 + $0x40] sm:$0xff]
        %v277 = vld [vmem:[%s226 + $0x48] sm:$0xff]
        %v278 = vld [vmem:[%s226 + $0x50] sm:$0xff]
        %v279 = vld [vmem:[%s226 + $0x58] sm:$0xff]
        %v280 = vld [vmem:[%s226 + $0x60] sm:$0xff]
        %v281 = vld [vmem:[%s226 + $0x68] sm:$0xff]
        %v282 = vld [vmem:[%s226 + $0x70] sm:$0xff]
        %v283 = vld [vmem:[%s226 + $0x78] sm:$0xff]
        %v284 = vld [vmem:[%s226 + $0x80] sm:$0xff]
        %v285 = vld [vmem:[%s226 + $0x88] sm:$0xff]
        %v286 = vld [vmem:[%s226 + $0x90] sm:$0xff]
        %v287 = vld [vmem:[%s226 + $0x98] sm:$0xff]
        %v288 = vld [vmem:[%s226 + $0xa0] sm:$0xff]
        %v289 = vld [vmem:[%s226 + $0xa8] sm:$0xff]
        %v290 = vld [vmem:[%s226 + $0xb0] sm:$0xff]
        %v291 = vld [vmem:[%s226 + $0xb8] sm:$0xff]
        %v292 = vld [vmem:[%s226 + $0xc0] sm:$0xff]
        %v293 = vld [vmem:[%s226 + $0xc8] sm:$0xff]
        %v294 = vld [vmem:[%s226 + $0xd0] sm:$0xff]
        %v295 = vld [vmem:[%s226 + $0xd8] sm:$0xff]
        %v296 = vld [vmem:[%s226 + $0xe0] sm:$0xff]
        %v297 = vld [vmem:[%s226 + $0xe8] sm:$0xff]
        %v298 = vld [vmem:[%s226 + $0xf0] sm:$0xff]
        %v299 = vld [vmem:[%s226 + $0xf8] sm:$0xff]
        %v300 = vld [vmem:[%s226 + $0x100] sm:$0xff]
        %v301 = vld [vmem:[%s226 + $0x108] sm:$0xff]
        %v302 = vld [vmem:[%s226 + $0x110] sm:$0xff]
        %v303 = vld [vmem:[%s226 + $0x118] sm:$0xff]
        %v304 = vld [vmem:[%s226 + $0x120] sm:$0xff]
        %v305 = vld [vmem:[%s226 + $0x128] sm:$0xff]
        %v306 = vld [vmem:[%s226 + $0x130] sm:$0xff]
        %v307 = vld [vmem:[%s226 + $0x138] sm:$0xff]
        %v308 = vld [vmem:[%s226 + $0x140] sm:$0xff]
        %v309 = vld [vmem:[%s226 + $0x148] sm:$0xff]
        %v310 = vld [vmem:[%s226 + $0x150] sm:$0xff]
        %v311 = vld [vmem:[%s226 + $0x158] sm:$0xff]
        %v312 = vld [vmem:[%s226 + $0x160] sm:$0xff]
        %v313 = vld [vmem:[%s226 + $0x168] sm:$0xff]
        %v314 = vld [vmem:[%s226 + $0x170] sm:$0xff]
        %v315 = vld [vmem:[%s226 + $0x178] sm:$0xff]
        %v316 = vld [vmem:[%s226 + $0x180] sm:$0xff]
        %v317 = vld [vmem:[%s226 + $0x188] sm:$0xff]
        %v318 = vld [vmem:[%s226 + $0x190] sm:$0xff]
        %v319 = vld [vmem:[%s226 + $0x198] sm:$0xff]
        %v320 = vld [vmem:[%s226 + $0x1a0] sm:$0xff]
        %v321 = vld [vmem:[%s226 + $0x1a8] sm:$0xff]
        %v322 = vld [vmem:[%s226 + $0x1b0] sm:$0xff]
        %v323 = vld [vmem:[%s226 + $0x1b8] sm:$0xff]
        %v324 = vld [vmem:[%s226 + $0x1c0] sm:$0xff]
        %v325 = vld [vmem:[%s226 + $0x1c8] sm:$0xff]
        %v326 = vld [vmem:[%s226 + $0x1d0] sm:$0xff]
        %v327 = vld [vmem:[%s226 + $0x1d8] sm:$0xff]
        %v328 = vld [vmem:[%s226 + $0x1e0] sm:$0xff]
        %v329 = vld [vmem:[%s226 + $0x1e8] sm:$0xff]
        %v330 = vld [vmem:[%s226 + $0x1f0] sm:$0xff]
        %v331 = vld [vmem:[%s226 + $0x1f8] sm:$0xff]
        %v332 = vld [vmem:[%s226 + $0x200] sm:$0xff]
        %v333 = vld [vmem:[%s226 + $0x208] sm:$0xff]
        %v334 = vld [vmem:[%s226 + $0x210] sm:$0xff]
        %v335 = vld [vmem:[%s226 + $0x218] sm:$0xff]
        %v336 = vld [vmem:[%s226 + $0x220] sm:$0xff]
        %v337 = vld [vmem:[%s226 + $0x228] sm:$0xff]
        %v338 = vld [vmem:[%s226 + $0x230] sm:$0xff]
        %v339 = vld [vmem:[%s226 + $0x238] sm:$0xff]
        %v340 = vld [vmem:[%s226 + $0x240] sm:$0xff]
        %v341 = vld [vmem:[%s226 + $0x248] sm:$0xff]
        %v342 = vld [vmem:[%s226 + $0x250] sm:$0xff]
        %v343 = vld [vmem:[%s226 + $0x258] sm:$0xff]
        %v344 = vld [vmem:[%s226 + $0x260] sm:$0xff]
        %v345 = vld [vmem:[%s226 + $0x268] sm:$0xff]
        %v346 = vld [vmem:[%s226 + $0x270] sm:$0xff]
        %v347 = vld [vmem:[%s226 + $0x278] sm:$0xff]
        %v348 = vld [vmem:[%s226 + $0x280] sm:$0xff]
        %v349 = vld [vmem:[%s226 + $0x288] sm:$0xff]
        %v350 = vld [vmem:[%s226 + $0x290] sm:$0xff]
        %v351 = vld [vmem:[%s226 + $0x298] sm:$0xff]
        %v352 = vld [vmem:[%s226 + $0x2a0] sm:$0xff]
        %v353 = vld [vmem:[%s226 + $0x2a8] sm:$0xff]
        %v354 = vld [vmem:[%s226 + $0x2b0] sm:$0xff]
        %v355 = vld [vmem:[%s226 + $0x2b8] sm:$0xff]
        %v356 = vld [vmem:[%s226 + $0x2c0] sm:$0xff]
        %v357 = vld [vmem:[%s226 + $0x2c8] sm:$0xff]
        %v358 = vld [vmem:[%s226 + $0x2d0] sm:$0xff]
        %v359 = vld [vmem:[%s226 + $0x2d8] sm:$0xff]
        %v360 = vld [vmem:[%s226 + $0x2e0] sm:$0xff]
        %v361 = vld [vmem:[%s226 + $0x2e8] sm:$0xff]
        %v362 = vld [vmem:[%s226 + $0x2f0] sm:$0xff]
        %v363 = vld [vmem:[%s226 + $0x2f8] sm:$0xff]
        %v364 = vld [vmem:[%s226 + $0x300] sm:$0xff]
        %v365 = vld [vmem:[%s226 + $0x308] sm:$0xff]
        %v366 = vld [vmem:[%s226 + $0x310] sm:$0xff]
        %v367 = vld [vmem:[%s226 + $0x318] sm:$0xff]
        %v368 = vld [vmem:[%s226 + $0x320] sm:$0xff]
        %v369 = vld [vmem:[%s226 + $0x328] sm:$0xff]
        %v370 = vld [vmem:[%s226 + $0x330] sm:$0xff]
        %v371 = vld [vmem:[%s226 + $0x338] sm:$0xff]
        %v372 = vld [vmem:[%s226 + $0x340] sm:$0xff]
        %v373 = vld [vmem:[%s226 + $0x348] sm:$0xff]
        %v374 = vld [vmem:[%s226 + $0x350] sm:$0xff]
        %v375 = vld [vmem:[%s226 + $0x358] sm:$0xff]
        %v376 = vld [vmem:[%s226 + $0x360] sm:$0xff]
        %v377 = vld [vmem:[%s226 + $0x368] sm:$0xff]
        %v378 = vld [vmem:[%s226 + $0x370] sm:$0xff]
        %v379 = vld [vmem:[%s226 + $0x378] sm:$0xff]
        %v380 = vld [vmem:[%s226 + $0x380] sm:$0xff]
        %v381 = vld [vmem:[%s226 + $0x388] sm:$0xff]
        %v382 = vld [vmem:[%s226 + $0x390] sm:$0xff]
        %v383 = vld [vmem:[%s226 + $0x398] sm:$0xff]
        %v384 = vld [vmem:[%s226 + $0x3a0] sm:$0xff]
        %v385 = vld [vmem:[%s226 + $0x3a8] sm:$0xff]
        %v386 = vld [vmem:[%s226 + $0x3b0] sm:$0xff]
        %v387 = vld [vmem:[%s226 + $0x3b8] sm:$0xff]
        %v388 = vld [vmem:[%s226 + $0x3c0] sm:$0xff]
        %v389 = vld [vmem:[%s226 + $0x3c8] sm:$0xff]
        %v390 = vld [vmem:[%s226 + $0x3d0] sm:$0xff]
        %v391 = vld [vmem:[%s226 + $0x3d8] sm:$0xff]
        %v392 = vld [vmem:[%s226 + $0x3e0] sm:$0xff]
        %v393 = vld [vmem:[%s226 + $0x3e8] sm:$0xff]
        %v394 = vld [vmem:[%s226 + $0x3f0] sm:$0xff]
        %v395 = vld [vmem:[%s226 + $0x3f8] sm:$0xff]
        %v396 = vld [vmem:[%s1] sm:$0xff]
        %v397 = vld [vmem:[%s1 + $0x8] sm:$0xff]
        %v398 = vld [vmem:[%s1 + $0x10] sm:$0xff]
        %v399 = vld [vmem:[%s1 + $0x18] sm:$0xff]
        %v400 = vld [vmem:[%s1 + $0x20] sm:$0xff]
        %v401 = vld [vmem:[%s1 + $0x28] sm:$0xff]
        %v402 = vld [vmem:[%s1 + $0x30] sm:$0xff]
        %v403 = vld [vmem:[%s1 + $0x38] sm:$0xff]
        %v404 = vld [vmem:[%s1 + $0x40] sm:$0xff]
        %v405 = vld [vmem:[%s1 + $0x48] sm:$0xff]
        %v406 = vld [vmem:[%s1 + $0x50] sm:$0xff]
        %v407 = vld [vmem:[%s1 + $0x58] sm:$0xff]
        %v408 = vld [vmem:[%s1 + $0x60] sm:$0xff]
        %v409 = vld [vmem:[%s1 + $0x68] sm:$0xff]
        %v410 = vld [vmem:[%s1 + $0x70] sm:$0xff]
        %v411 = vld [vmem:[%s1 + $0x78] sm:$0xff]
        %v412 = vld [vmem:[%s1 + $0x80] sm:$0xff]
        %v413 = vld [vmem:[%s1 + $0x88] sm:$0xff]
        %v414 = vld [vmem:[%s1 + $0x90] sm:$0xff]
        %v415 = vld [vmem:[%s1 + $0x98] sm:$0xff]
        %v416 = vld [vmem:[%s1 + $0xa0] sm:$0xff]
        %v417 = vld [vmem:[%s1 + $0xa8] sm:$0xff]
        %v418 = vld [vmem:[%s1 + $0xb0] sm:$0xff]
        %v419 = vld [vmem:[%s1 + $0xb8] sm:$0xff]
        %v420 = vld [vmem:[%s1 + $0xc0] sm:$0xff]
        %v421 = vld [vmem:[%s1 + $0xc8] sm:$0xff]
        %v422 = vld [vmem:[%s1 + $0xd0] sm:$0xff]
        %v423 = vld [vmem:[%s1 + $0xd8] sm:$0xff]
        %v424 = vld [vmem:[%s1 + $0xe0] sm:$0xff]
        %v425 = vld [vmem:[%s1 + $0xe8] sm:$0xff]
        %v426 = vld [vmem:[%s1 + $0xf0] sm:$0xff]
        %v427 = vld [vmem:[%s1 + $0xf8] sm:$0xff]
        %v428 = vld [vmem:[%s2] sm:$0x1]
        %v430 = vperm.slane %v428, 0
        %432 = vmatpush.msra.mxu0 %v411
        %433 = vmatpush.msra.mxu0 %v410
        %434 = vmatpush.msra.mxu0 %v409
        %435 = vmatpush.msra.mxu0 %v408
        %436 = vmatpush.msra.mxu0 %v407
        %437 = vmatpush.msra.mxu0 %v406
        %438 = vmatpush.msra.mxu0 %v405
        %439 = vmatpush.msra.mxu0 %v404
        %440 = vmatpush.msra.mxu0 %v403
        %441 = vmatpush.msra.mxu0 %v402
        %442 = vmatpush.msra.mxu0 %v401
        %443 = vmatpush.msra.mxu0 %v400
        %444 = vmatpush.msra.mxu0 %v399
        %445 = vmatpush.msra.mxu0 %v398
        %446 = vmatpush.msra.mxu0 %v397
        %447 = vmatpush.msra.mxu0 %v396
        %448 = vmatmul.f32.gmra.mxu0 %v268
        %v449 = vpop.f32.mrf.mxu0
        %v450 = vadd.f32 %v430, %v449
        %451 = vmatmul.f32.gmra.mxu0 %v270
        %v452 = vpop.f32.mrf.mxu0
        %v453 = vadd.f32 %v430, %v452
        %454 = vmatmul.f32.gmra.mxu0 %v272
        %v455 = vpop.f32.mrf.mxu0
        %v456 = vadd.f32 %v430, %v455
        %457 = vmatmul.f32.gmra.mxu0 %v274
        %v458 = vpop.f32.mrf.mxu0
        %v459 = vadd.f32 %v430, %v458
        %460 = vmatmul.f32.gmra.mxu0 %v276
        %v461 = vpop.f32.mrf.mxu0
        %v462 = vadd.f32 %v430, %v461
        %463 = vmatmul.f32.gmra.mxu0 %v278
        %v464 = vpop.f32.mrf.mxu0
        %v465 = vadd.f32 %v430, %v464
        %466 = vmatmul.f32.gmra.mxu0 %v280
        %v467 = vpop.f32.mrf.mxu0
        %v468 = vadd.f32 %v430, %v467
        %469 = vmatmul.f32.gmra.mxu0 %v282
        %v470 = vpop.f32.mrf.mxu0
        %v471 = vadd.f32 %v430, %v470
        %472 = vmatmul.f32.gmra.mxu0 %v284
        %v473 = vpop.f32.mrf.mxu0
        %v474 = vadd.f32 %v430, %v473
        %475 = vmatmul.f32.gmra.mxu0 %v286
        %v476 = vpop.f32.mrf.mxu0
        %v477 = vadd.f32 %v430, %v476
        %478 = vmatmul.f32.gmra.mxu0 %v288
        %v479 = vpop.f32.mrf.mxu0
        %v480 = vadd.f32 %v430, %v479
        %481 = vmatmul.f32.gmra.mxu0 %v290
        %v482 = vpop.f32.mrf.mxu0
        %v483 = vadd.f32 %v430, %v482
        %484 = vmatmul.f32.gmra.mxu0 %v292
        %v485 = vpop.f32.mrf.mxu0
        %v486 = vadd.f32 %v430, %v485
        %487 = vmatmul.f32.gmra.mxu0 %v294
        %v488 = vpop.f32.mrf.mxu0
        %v489 = vadd.f32 %v430, %v488
        %490 = vmatmul.f32.gmra.mxu0 %v296
        %v491 = vpop.f32.mrf.mxu0
        %v492 = vadd.f32 %v430, %v491
        %493 = vmatmul.f32.gmra.mxu0 %v298
        %v494 = vpop.f32.mrf.mxu0
        %v495 = vadd.f32 %v430, %v494
        %496 = vmatmul.f32.gmra.mxu0 %v300
        %v497 = vpop.f32.mrf.mxu0
        %v498 = vadd.f32 %v430, %v497
        %499 = vmatmul.f32.gmra.mxu0 %v302
        %v500 = vpop.f32.mrf.mxu0
        %v501 = vadd.f32 %v430, %v500
        %502 = vmatmul.f32.gmra.mxu0 %v304
        %v503 = vpop.f32.mrf.mxu0
        %v504 = vadd.f32 %v430, %v503
        %505 = vmatmul.f32.gmra.mxu0 %v306
        %v506 = vpop.f32.mrf.mxu0
        %v507 = vadd.f32 %v430, %v506
        %508 = vmatmul.f32.gmra.mxu0 %v308
        %v509 = vpop.f32.mrf.mxu0
        %v510 = vadd.f32 %v430, %v509
        %511 = vmatmul.f32.gmra.mxu0 %v310
        %v512 = vpop.f32.mrf.mxu0
        %v513 = vadd.f32 %v430, %v512
        %514 = vmatmul.f32.gmra.mxu0 %v312
        %v515 = vpop.f32.mrf.mxu0
        %v516 = vadd.f32 %v430, %v515
        %517 = vmatmul.f32.gmra.mxu0 %v314
        %v518 = vpop.f32.mrf.mxu0
        %v519 = vadd.f32 %v430, %v518
        %520 = vmatmul.f32.gmra.mxu0 %v316
        %v521 = vpop.f32.mrf.mxu0
        %v522 = vadd.f32 %v430, %v521
        %523 = vmatmul.f32.gmra.mxu0 %v318
        %v524 = vpop.f32.mrf.mxu0
        %v525 = vadd.f32 %v430, %v524
        %526 = vmatmul.f32.gmra.mxu0 %v320
        %v527 = vpop.f32.mrf.mxu0
        %v528 = vadd.f32 %v430, %v527
        %529 = vmatmul.f32.gmra.mxu0 %v322
        %v530 = vpop.f32.mrf.mxu0
        %v531 = vadd.f32 %v430, %v530
        %532 = vmatmul.f32.gmra.mxu0 %v324
        %v533 = vpop.f32.mrf.mxu0
        %v534 = vadd.f32 %v430, %v533
        %535 = vmatmul.f32.gmra.mxu0 %v326
        %v536 = vpop.f32.mrf.mxu0
        %v537 = vadd.f32 %v430, %v536
        %538 = vmatmul.f32.gmra.mxu0 %v328
        %v539 = vpop.f32.mrf.mxu0
        %v540 = vadd.f32 %v430, %v539
        %541 = vmatmul.f32.gmra.mxu0 %v330
        %v542 = vpop.f32.mrf.mxu0
        %v543 = vadd.f32 %v430, %v542
        %544 = vmatmul.f32.gmra.mxu0 %v332
        %v545 = vpop.f32.mrf.mxu0
        %v546 = vadd.f32 %v430, %v545
        %547 = vmatmul.f32.gmra.mxu0 %v334
        %v548 = vpop.f32.mrf.mxu0
        %v549 = vadd.f32 %v430, %v548
        %550 = vmatmul.f32.gmra.mxu0 %v336
        %v551 = vpop.f32.mrf.mxu0
        %v552 = vadd.f32 %v430, %v551
        %553 = vmatmul.f32.gmra.mxu0 %v338
        %v554 = vpop.f32.mrf.mxu0
        %v555 = vadd.f32 %v430, %v554
        %556 = vmatmul.f32.gmra.mxu0 %v340
        %v557 = vpop.f32.mrf.mxu0
        %v558 = vadd.f32 %v430, %v557
        %559 = vmatmul.f32.gmra.mxu0 %v342
        %v560 = vpop.f32.mrf.mxu0
        %v561 = vadd.f32 %v430, %v560
        %562 = vmatmul.f32.gmra.mxu0 %v344
        %v563 = vpop.f32.mrf.mxu0
        %v564 = vadd.f32 %v430, %v563
        %565 = vmatmul.f32.gmra.mxu0 %v346
        %v566 = vpop.f32.mrf.mxu0
        %v567 = vadd.f32 %v430, %v566
        %568 = vmatmul.f32.gmra.mxu0 %v348
        %v569 = vpop.f32.mrf.mxu0
        %v570 = vadd.f32 %v430, %v569
        %571 = vmatmul.f32.gmra.mxu0 %v350
        %v572 = vpop.f32.mrf.mxu0
        %v573 = vadd.f32 %v430, %v572
        %574 = vmatmul.f32.gmra.mxu0 %v352
        %v575 = vpop.f32.mrf.mxu0
        %v576 = vadd.f32 %v430, %v575
        %577 = vmatmul.f32.gmra.mxu0 %v354
        %v578 = vpop.f32.mrf.mxu0
        %v579 = vadd.f32 %v430, %v578
        %580 = vmatmul.f32.gmra.mxu0 %v356
        %v581 = vpop.f32.mrf.mxu0
        %v582 = vadd.f32 %v430, %v581
        %583 = vmatmul.f32.gmra.mxu0 %v358
        %v584 = vpop.f32.mrf.mxu0
        %v585 = vadd.f32 %v430, %v584
        %586 = vmatmul.f32.gmra.mxu0 %v360
        %v587 = vpop.f32.mrf.mxu0
        %v588 = vadd.f32 %v430, %v587
        %589 = vmatmul.f32.gmra.mxu0 %v362
        %v590 = vpop.f32.mrf.mxu0
        %v591 = vadd.f32 %v430, %v590
        %592 = vmatmul.f32.gmra.mxu0 %v364
        %v593 = vpop.f32.mrf.mxu0
        %v594 = vadd.f32 %v430, %v593
        %595 = vmatmul.f32.gmra.mxu0 %v366
        %v596 = vpop.f32.mrf.mxu0
        %v597 = vadd.f32 %v430, %v596
        %598 = vmatmul.f32.gmra.mxu0 %v368
        %v599 = vpop.f32.mrf.mxu0
        %v600 = vadd.f32 %v430, %v599
        %601 = vmatmul.f32.gmra.mxu0 %v370
        %v602 = vpop.f32.mrf.mxu0
        %v603 = vadd.f32 %v430, %v602
        %604 = vmatmul.f32.gmra.mxu0 %v372
        %v605 = vpop.f32.mrf.mxu0
        %v606 = vadd.f32 %v430, %v605
        %607 = vmatmul.f32.gmra.mxu0 %v374
        %v608 = vpop.f32.mrf.mxu0
        %v609 = vadd.f32 %v430, %v608
        %610 = vmatmul.f32.gmra.mxu0 %v376
        %v611 = vpop.f32.mrf.mxu0
        %v612 = vadd.f32 %v430, %v611
        %613 = vmatmul.f32.gmra.mxu0 %v378
        %v614 = vpop.f32.mrf.mxu0
        %v615 = vadd.f32 %v430, %v614
        %616 = vmatmul.f32.gmra.mxu0 %v380
        %v617 = vpop.f32.mrf.mxu0
        %v618 = vadd.f32 %v430, %v617
        %619 = vmatmul.f32.gmra.mxu0 %v382
        %v620 = vpop.f32.mrf.mxu0
        %v621 = vadd.f32 %v430, %v620
        %622 = vmatmul.f32.gmra.mxu0 %v384
        %v623 = vpop.f32.mrf.mxu0
        %v624 = vadd.f32 %v430, %v623
        %625 = vmatmul.f32.gmra.mxu0 %v386
        %v626 = vpop.f32.mrf.mxu0
        %v627 = vadd.f32 %v430, %v626
        %628 = vmatmul.f32.gmra.mxu0 %v388
        %v629 = vpop.f32.mrf.mxu0
        %v630 = vadd.f32 %v430, %v629
        %631 = vmatmul.f32.gmra.mxu0 %v390
        %v632 = vpop.f32.mrf.mxu0
        %v633 = vadd.f32 %v430, %v632
        %634 = vmatmul.f32.gmra.mxu0 %v392
        %v635 = vpop.f32.mrf.mxu0
        %v636 = vadd.f32 %v430, %v635
        %637 = vmatmul.f32.gmra.mxu0 %v394
        %v638 = vpop.f32.mrf.mxu0
        %v639 = vadd.f32 %v430, %v638
        %640 = vdwg.mxu0
        %641 = vmatpush.msra.mxu0 %v427
        %642 = vmatpush.msra.mxu0 %v426
        %643 = vmatpush.msra.mxu0 %v425
        %644 = vmatpush.msra.mxu0 %v424
        %645 = vmatpush.msra.mxu0 %v423
        %646 = vmatpush.msra.mxu0 %v422
        %647 = vmatpush.msra.mxu0 %v421
        %648 = vmatpush.msra.mxu0 %v420
        %649 = vmatpush.msra.mxu0 %v419
        %650 = vmatpush.msra.mxu0 %v418
        %651 = vmatpush.msra.mxu0 %v417
        %652 = vmatpush.msra.mxu0 %v416
        %653 = vmatpush.msra.mxu0 %v415
        %654 = vmatpush.msra.mxu0 %v414
        %655 = vmatpush.msra.mxu0 %v413
        %656 = vmatpush.msra.mxu0 %v412
        %657 = vmatmul.f32.gmra.mxu0 %v269
        %v658 = vpop.f32.mrf.mxu0
        %v659 = vadd.f32 %v450, %v658
        %660 = vmatmul.f32.gmra.mxu0 %v271
        %v661 = vpop.f32.mrf.mxu0
        %v662 = vadd.f32 %v453, %v661
        %663 = vmatmul.f32.gmra.mxu0 %v273
        %v664 = vpop.f32.mrf.mxu0
        %v665 = vadd.f32 %v456, %v664
        %666 = vmatmul.f32.gmra.mxu0 %v275
        %v667 = vpop.f32.mrf.mxu0
        %v668 = vadd.f32 %v459, %v667
        %669 = vmatmul.f32.gmra.mxu0 %v277
        %v670 = vpop.f32.mrf.mxu0
        %v671 = vadd.f32 %v462, %v670
        %672 = vmatmul.f32.gmra.mxu0 %v279
        %v673 = vpop.f32.mrf.mxu0
        %v674 = vadd.f32 %v465, %v673
        %675 = vmatmul.f32.gmra.mxu0 %v281
        %v676 = vpop.f32.mrf.mxu0
        %v677 = vadd.f32 %v468, %v676
        %678 = vmatmul.f32.gmra.mxu0 %v283
        %v679 = vpop.f32.mrf.mxu0
        %v680 = vadd.f32 %v471, %v679
        %681 = vmatmul.f32.gmra.mxu0 %v285
        %v682 = vpop.f32.mrf.mxu0
        %v683 = vadd.f32 %v474, %v682
        %684 = vmatmul.f32.gmra.mxu0 %v287
        %v685 = vpop.f32.mrf.mxu0
        %v686 = vadd.f32 %v477, %v685
        %687 = vmatmul.f32.gmra.mxu0 %v289
        %v688 = vpop.f32.mrf.mxu0
        %v689 = vadd.f32 %v480, %v688
        %690 = vmatmul.f32.gmra.mxu0 %v291
        %v691 = vpop.f32.mrf.mxu0
        %v692 = vadd.f32 %v483, %v691
        %693 = vmatmul.f32.gmra.mxu0 %v293
        %v694 = vpop.f32.mrf.mxu0
        %v695 = vadd.f32 %v486, %v694
        %696 = vmatmul.f32.gmra.mxu0 %v295
        %v697 = vpop.f32.mrf.mxu0
        %v698 = vadd.f32 %v489, %v697
        %699 = vmatmul.f32.gmra.mxu0 %v297
        %v700 = vpop.f32.mrf.mxu0
        %v701 = vadd.f32 %v492, %v700
        %702 = vmatmul.f32.gmra.mxu0 %v299
        %v703 = vpop.f32.mrf.mxu0
        %v704 = vadd.f32 %v495, %v703
        %705 = vmatmul.f32.gmra.mxu0 %v301
        %v706 = vpop.f32.mrf.mxu0
        %v707 = vadd.f32 %v498, %v706
        %708 = vmatmul.f32.gmra.mxu0 %v303
        %v709 = vpop.f32.mrf.mxu0
        %v710 = vadd.f32 %v501, %v709
        %711 = vmatmul.f32.gmra.mxu0 %v305
        %v712 = vpop.f32.mrf.mxu0
        %v713 = vadd.f32 %v504, %v712
        %714 = vmatmul.f32.gmra.mxu0 %v307
        %v715 = vpop.f32.mrf.mxu0
        %v716 = vadd.f32 %v507, %v715
        %717 = vmatmul.f32.gmra.mxu0 %v309
        %v718 = vpop.f32.mrf.mxu0
        %v719 = vadd.f32 %v510, %v718
        %720 = vmatmul.f32.gmra.mxu0 %v311
        %v721 = vpop.f32.mrf.mxu0
        %v722 = vadd.f32 %v513, %v721
        %723 = vmatmul.f32.gmra.mxu0 %v313
        %v724 = vpop.f32.mrf.mxu0
        %v725 = vadd.f32 %v516, %v724
        %726 = vmatmul.f32.gmra.mxu0 %v315
        %v727 = vpop.f32.mrf.mxu0
        %v728 = vadd.f32 %v519, %v727
        %729 = vmatmul.f32.gmra.mxu0 %v317
        %v730 = vpop.f32.mrf.mxu0
        %v731 = vadd.f32 %v522, %v730
        %732 = vmatmul.f32.gmra.mxu0 %v319
        %v733 = vpop.f32.mrf.mxu0
        %v734 = vadd.f32 %v525, %v733
        %735 = vmatmul.f32.gmra.mxu0 %v321
        %v736 = vpop.f32.mrf.mxu0
        %v737 = vadd.f32 %v528, %v736
        %738 = vmatmul.f32.gmra.mxu0 %v323
        %v739 = vpop.f32.mrf.mxu0
        %v740 = vadd.f32 %v531, %v739
        %741 = vmatmul.f32.gmra.mxu0 %v325
        %v742 = vpop.f32.mrf.mxu0
        %v743 = vadd.f32 %v534, %v742
        %744 = vmatmul.f32.gmra.mxu0 %v327
        %v745 = vpop.f32.mrf.mxu0
        %v746 = vadd.f32 %v537, %v745
        %747 = vmatmul.f32.gmra.mxu0 %v329
        %v748 = vpop.f32.mrf.mxu0
        %v749 = vadd.f32 %v540, %v748
        %750 = vmatmul.f32.gmra.mxu0 %v331
        %v751 = vpop.f32.mrf.mxu0
        %v752 = vadd.f32 %v543, %v751
        %753 = vmatmul.f32.gmra.mxu0 %v333
        %v754 = vpop.f32.mrf.mxu0
        %v755 = vadd.f32 %v546, %v754
        %756 = vmatmul.f32.gmra.mxu0 %v335
        %v757 = vpop.f32.mrf.mxu0
        %v758 = vadd.f32 %v549, %v757
        %759 = vmatmul.f32.gmra.mxu0 %v337
        %v760 = vpop.f32.mrf.mxu0
        %v761 = vadd.f32 %v552, %v760
        %762 = vmatmul.f32.gmra.mxu0 %v339
        %v763 = vpop.f32.mrf.mxu0
        %v764 = vadd.f32 %v555, %v763
        %765 = vmatmul.f32.gmra.mxu0 %v341
        %v766 = vpop.f32.mrf.mxu0
        %v767 = vadd.f32 %v558, %v766
        %768 = vmatmul.f32.gmra.mxu0 %v343
        %v769 = vpop.f32.mrf.mxu0
        %v770 = vadd.f32 %v561, %v769
        %771 = vmatmul.f32.gmra.mxu0 %v345
        %v772 = vpop.f32.mrf.mxu0
        %v773 = vadd.f32 %v564, %v772
        %774 = vmatmul.f32.gmra.mxu0 %v347
        %v775 = vpop.f32.mrf.mxu0
        %v776 = vadd.f32 %v567, %v775
        %777 = vmatmul.f32.gmra.mxu0 %v349
        %v778 = vpop.f32.mrf.mxu0
        %v779 = vadd.f32 %v570, %v778
        %780 = vmatmul.f32.gmra.mxu0 %v351
        %v781 = vpop.f32.mrf.mxu0
        %v782 = vadd.f32 %v573, %v781
        %783 = vmatmul.f32.gmra.mxu0 %v353
        %v784 = vpop.f32.mrf.mxu0
        %v785 = vadd.f32 %v576, %v784
        %786 = vmatmul.f32.gmra.mxu0 %v355
        %v787 = vpop.f32.mrf.mxu0
        %v788 = vadd.f32 %v579, %v787
        %789 = vmatmul.f32.gmra.mxu0 %v357
        %v790 = vpop.f32.mrf.mxu0
        %v791 = vadd.f32 %v582, %v790
        %792 = vmatmul.f32.gmra.mxu0 %v359
        %v793 = vpop.f32.mrf.mxu0
        %v794 = vadd.f32 %v585, %v793
        %795 = vmatmul.f32.gmra.mxu0 %v361
        %v796 = vpop.f32.mrf.mxu0
        %v797 = vadd.f32 %v588, %v796
        %798 = vmatmul.f32.gmra.mxu0 %v363
        %v799 = vpop.f32.mrf.mxu0
        %v800 = vadd.f32 %v591, %v799
        %801 = vmatmul.f32.gmra.mxu0 %v365
        %v802 = vpop.f32.mrf.mxu0
        %v803 = vadd.f32 %v594, %v802
        %804 = vmatmul.f32.gmra.mxu0 %v367
        %v805 = vpop.f32.mrf.mxu0
        %v806 = vadd.f32 %v597, %v805
        %807 = vmatmul.f32.gmra.mxu0 %v369
        %v808 = vpop.f32.mrf.mxu0
        %v809 = vadd.f32 %v600, %v808
        %810 = vmatmul.f32.gmra.mxu0 %v371
        %v811 = vpop.f32.mrf.mxu0
        %v812 = vadd.f32 %v603, %v811
        %813 = vmatmul.f32.gmra.mxu0 %v373
        %v814 = vpop.f32.mrf.mxu0
        %v815 = vadd.f32 %v606, %v814
        %816 = vmatmul.f32.gmra.mxu0 %v375
        %v817 = vpop.f32.mrf.mxu0
        %v818 = vadd.f32 %v609, %v817
        %819 = vmatmul.f32.gmra.mxu0 %v377
        %v820 = vpop.f32.mrf.mxu0
        %v821 = vadd.f32 %v612, %v820
        %822 = vmatmul.f32.gmra.mxu0 %v379
        %v823 = vpop.f32.mrf.mxu0
        %v824 = vadd.f32 %v615, %v823
        %825 = vmatmul.f32.gmra.mxu0 %v381
        %v826 = vpop.f32.mrf.mxu0
        %v827 = vadd.f32 %v618, %v826
        %828 = vmatmul.f32.gmra.mxu0 %v383
        %v829 = vpop.f32.mrf.mxu0
        %v830 = vadd.f32 %v621, %v829
        %831 = vmatmul.f32.gmra.mxu0 %v385
        %v832 = vpop.f32.mrf.mxu0
        %v833 = vadd.f32 %v624, %v832
        %834 = vmatmul.f32.gmra.mxu0 %v387
        %v835 = vpop.f32.mrf.mxu0
        %v836 = vadd.f32 %v627, %v835
        %837 = vmatmul.f32.gmra.mxu0 %v389
        %v838 = vpop.f32.mrf.mxu0
        %v839 = vadd.f32 %v630, %v838
        %840 = vmatmul.f32.gmra.mxu0 %v391
        %v841 = vpop.f32.mrf.mxu0
        %v842 = vadd.f32 %v633, %v841
        %843 = vmatmul.f32.gmra.mxu0 %v393
        %v844 = vpop.f32.mrf.mxu0
        %v845 = vadd.f32 %v636, %v844
        %846 = vmatmul.f32.gmra.mxu0 %v395
        %v847 = vpop.f32.mrf.mxu0
        %v848 = vadd.f32 %v639, %v847
        %849 = vdwg.mxu0
        %vm850 = vcmp.gt.f32.partialorder %v659, 0.0
        %vm851 = vcmp.gt.f32.partialorder %v662, 0.0
        %vm852 = vcmp.gt.f32.partialorder %v665, 0.0
        %vm853 = vcmp.gt.f32.partialorder %v668, 0.0
        %vm854 = vcmp.gt.f32.partialorder %v671, 0.0
        %vm855 = vcmp.gt.f32.partialorder %v674, 0.0
        %vm856 = vcmp.gt.f32.partialorder %v677, 0.0
        %vm857 = vcmp.gt.f32.partialorder %v680, 0.0
        %vm858 = vcmp.gt.f32.partialorder %v683, 0.0
        %vm859 = vcmp.gt.f32.partialorder %v686, 0.0
        %vm860 = vcmp.gt.f32.partialorder %v689, 0.0
        %vm861 = vcmp.gt.f32.partialorder %v692, 0.0
        %vm862 = vcmp.gt.f32.partialorder %v695, 0.0
        %vm863 = vcmp.gt.f32.partialorder %v698, 0.0
        %vm864 = vcmp.gt.f32.partialorder %v701, 0.0
        %vm865 = vcmp.gt.f32.partialorder %v704, 0.0
        %vm866 = vcmp.gt.f32.partialorder %v707, 0.0
        %vm867 = vcmp.gt.f32.partialorder %v710, 0.0
        %vm868 = vcmp.gt.f32.partialorder %v713, 0.0
        %vm869 = vcmp.gt.f32.partialorder %v716, 0.0
        %vm870 = vcmp.gt.f32.partialorder %v719, 0.0
        %vm871 = vcmp.gt.f32.partialorder %v722, 0.0
        %vm872 = vcmp.gt.f32.partialorder %v725, 0.0
        %vm873 = vcmp.gt.f32.partialorder %v728, 0.0
        %vm874 = vcmp.gt.f32.partialorder %v731, 0.0
        %vm875 = vcmp.gt.f32.partialorder %v734, 0.0
        %vm876 = vcmp.gt.f32.partialorder %v737, 0.0
        %vm877 = vcmp.gt.f32.partialorder %v740, 0.0
        %vm878 = vcmp.gt.f32.partialorder %v743, 0.0
        %vm879 = vcmp.gt.f32.partialorder %v746, 0.0
        %vm880 = vcmp.gt.f32.partialorder %v749, 0.0
        %vm881 = vcmp.gt.f32.partialorder %v752, 0.0
        %vm882 = vcmp.gt.f32.partialorder %v755, 0.0
        %vm883 = vcmp.gt.f32.partialorder %v758, 0.0
        %vm884 = vcmp.gt.f32.partialorder %v761, 0.0
        %vm885 = vcmp.gt.f32.partialorder %v764, 0.0
        %vm886 = vcmp.gt.f32.partialorder %v767, 0.0
        %vm887 = vcmp.gt.f32.partialorder %v770, 0.0
        %vm888 = vcmp.gt.f32.partialorder %v773, 0.0
        %vm889 = vcmp.gt.f32.partialorder %v776, 0.0
        %vm890 = vcmp.gt.f32.partialorder %v779, 0.0
        %vm891 = vcmp.gt.f32.partialorder %v782, 0.0
        %vm892 = vcmp.gt.f32.partialorder %v785, 0.0
        %vm893 = vcmp.gt.f32.partialorder %v788, 0.0
        %vm894 = vcmp.gt.f32.partialorder %v791, 0.0
        %vm895 = vcmp.gt.f32.partialorder %v794, 0.0
        %vm896 = vcmp.gt.f32.partialorder %v797, 0.0
        %vm897 = vcmp.gt.f32.partialorder %v800, 0.0
        %vm898 = vcmp.gt.f32.partialorder %v803, 0.0
        %vm899 = vcmp.gt.f32.partialorder %v806, 0.0
        %vm900 = vcmp.gt.f32.partialorder %v809, 0.0
        %vm901 = vcmp.gt.f32.partialorder %v812, 0.0
        %vm902 = vcmp.gt.f32.partialorder %v815, 0.0
        %vm903 = vcmp.gt.f32.partialorder %v818, 0.0
        %vm904 = vcmp.gt.f32.partialorder %v821, 0.0
        %vm905 = vcmp.gt.f32.partialorder %v824, 0.0
        %vm906 = vcmp.gt.f32.partialorder %v827, 0.0
        %vm907 = vcmp.gt.f32.partialorder %v830, 0.0
        %vm908 = vcmp.gt.f32.partialorder %v833, 0.0
        %vm909 = vcmp.gt.f32.partialorder %v836, 0.0
        %vm910 = vcmp.gt.f32.partialorder %v839, 0.0
        %vm911 = vcmp.gt.f32.partialorder %v842, 0.0
        %vm912 = vcmp.gt.f32.partialorder %v845, 0.0
        %vm913 = vcmp.gt.f32.partialorder %v848, 0.0
        %v914 = vsel %vm850, 1, 0
        %v915 = vsel %vm851, 1, 0
        %v916 = vsel %vm852, 1, 0
        %v917 = vsel %vm853, 1, 0
        %v918 = vsel %vm854, 1, 0
        %v919 = vsel %vm855, 1, 0
        %v920 = vsel %vm856, 1, 0
        %v921 = vsel %vm857, 1, 0
        %v922 = vsel %vm858, 1, 0
        %v923 = vsel %vm859, 1, 0
        %v924 = vsel %vm860, 1, 0
        %v925 = vsel %vm861, 1, 0
        %v926 = vsel %vm862, 1, 0
        %v927 = vsel %vm863, 1, 0
        %v928 = vsel %vm864, 1, 0
        %v929 = vsel %vm865, 1, 0
        %v930 = vsel %vm866, 1, 0
        %v931 = vsel %vm867, 1, 0
        %v932 = vsel %vm868, 1, 0
        %v933 = vsel %vm869, 1, 0
        %v934 = vsel %vm870, 1, 0
        %v935 = vsel %vm871, 1, 0
        %v936 = vsel %vm872, 1, 0
        %v937 = vsel %vm873, 1, 0
        %v938 = vsel %vm874, 1, 0
        %v939 = vsel %vm875, 1, 0
        %v940 = vsel %vm876, 1, 0
        %v941 = vsel %vm877, 1, 0
        %v942 = vsel %vm878, 1, 0
        %v943 = vsel %vm879, 1, 0
        %v944 = vsel %vm880, 1, 0
        %v945 = vsel %vm881, 1, 0
        %v946 = vsel %vm882, 1, 0
        %v947 = vsel %vm883, 1, 0
        %v948 = vsel %vm884, 1, 0
        %v949 = vsel %vm885, 1, 0
        %v950 = vsel %vm886, 1, 0
        %v951 = vsel %vm887, 1, 0
        %v952 = vsel %vm888, 1, 0
        %v953 = vsel %vm889, 1, 0
        %v954 = vsel %vm890, 1, 0
        %v955 = vsel %vm891, 1, 0
        %v956 = vsel %vm892, 1, 0
        %v957 = vsel %vm893, 1, 0
        %v958 = vsel %vm894, 1, 0
        %v959 = vsel %vm895, 1, 0
        %v960 = vsel %vm896, 1, 0
        %v961 = vsel %vm897, 1, 0
        %v962 = vsel %vm898, 1, 0
        %v963 = vsel %vm899, 1, 0
        %v964 = vsel %vm900, 1, 0
        %v965 = vsel %vm901, 1, 0
        %v966 = vsel %vm902, 1, 0
        %v967 = vsel %vm903, 1, 0
        %v968 = vsel %vm904, 1, 0
        %v969 = vsel %vm905, 1, 0
        %v970 = vsel %vm906, 1, 0
        %v971 = vsel %vm907, 1, 0
        %v972 = vsel %vm908, 1, 0
        %v973 = vsel %vm909, 1, 0
        %v974 = vsel %vm910, 1, 0
        %v975 = vsel %vm911, 1, 0
        %v976 = vsel %vm912, 1, 0
        %v977 = vsel %vm913, 1, 0
        %978 = vset.pattern.permute.xlu0 0
        %979 = vperm.xlu0 %978, %v914
        %v980 = vpop.permute.xlu0 %979
        %981 = vset.pattern.permute.xlu0 0
        %982 = vperm.xlu0 %981, %v915
        %v983 = vpop.permute.xlu0 %982
        %984 = vset.pattern.permute.xlu0 0
        %985 = vperm.xlu0 %984, %v916
        %v986 = vpop.permute.xlu0 %985
        %987 = vset.pattern.permute.xlu0 0
        %988 = vperm.xlu0 %987, %v917
        %v989 = vpop.permute.xlu0 %988
        %990 = vset.pattern.permute.xlu0 0
        %991 = vperm.xlu0 %990, %v918
        %v992 = vpop.permute.xlu0 %991
        %993 = vset.pattern.permute.xlu0 0
        %994 = vperm.xlu0 %993, %v919
        %v995 = vpop.permute.xlu0 %994
        %996 = vset.pattern.permute.xlu0 0
        %997 = vperm.xlu0 %996, %v920
        %v998 = vpop.permute.xlu0 %997
        %999 = vset.pattern.permute.xlu0 0
        %1000 = vperm.xlu0 %999, %v921
        %v1001 = vpop.permute.xlu0 %1000
        %1002 = vset.pattern.permute.xlu0 0
        %1003 = vperm.xlu0 %1002, %v922
        %v1004 = vpop.permute.xlu0 %1003
        %1005 = vset.pattern.permute.xlu0 0
        %1006 = vperm.xlu0 %1005, %v923
        %v1007 = vpop.permute.xlu0 %1006
        %1008 = vset.pattern.permute.xlu0 0
        %1009 = vperm.xlu0 %1008, %v924
        %v1010 = vpop.permute.xlu0 %1009
        %1011 = vset.pattern.permute.xlu0 0
        %1012 = vperm.xlu0 %1011, %v925
        %v1013 = vpop.permute.xlu0 %1012
        %1014 = vset.pattern.permute.xlu0 0
        %1015 = vperm.xlu0 %1014, %v926
        %v1016 = vpop.permute.xlu0 %1015
        %1017 = vset.pattern.permute.xlu0 0
        %1018 = vperm.xlu0 %1017, %v927
        %v1019 = vpop.permute.xlu0 %1018
        %1020 = vset.pattern.permute.xlu0 0
        %1021 = vperm.xlu0 %1020, %v928
        %v1022 = vpop.permute.xlu0 %1021
        %1023 = vset.pattern.permute.xlu0 0
        %1024 = vperm.xlu0 %1023, %v929
        %v1025 = vpop.permute.xlu0 %1024
        %1026 = vset.pattern.permute.xlu0 0
        %1027 = vperm.xlu0 %1026, %v930
        %v1028 = vpop.permute.xlu0 %1027
        %1029 = vset.pattern.permute.xlu0 0
        %1030 = vperm.xlu0 %1029, %v931
        %v1031 = vpop.permute.xlu0 %1030
        %1032 = vset.pattern.permute.xlu0 0
        %1033 = vperm.xlu0 %1032, %v932
        %v1034 = vpop.permute.xlu0 %1033
        %1035 = vset.pattern.permute.xlu0 0
        %1036 = vperm.xlu0 %1035, %v933
        %v1037 = vpop.permute.xlu0 %1036
        %1038 = vset.pattern.permute.xlu0 0
        %1039 = vperm.xlu0 %1038, %v934
        %v1040 = vpop.permute.xlu0 %1039
        %1041 = vset.pattern.permute.xlu0 0
        %1042 = vperm.xlu0 %1041, %v935
        %v1043 = vpop.permute.xlu0 %1042
        %1044 = vset.pattern.permute.xlu0 0
        %1045 = vperm.xlu0 %1044, %v936
        %v1046 = vpop.permute.xlu0 %1045
        %1047 = vset.pattern.permute.xlu0 0
        %1048 = vperm.xlu0 %1047, %v937
        %v1049 = vpop.permute.xlu0 %1048
        %1050 = vset.pattern.permute.xlu0 0
        %1051 = vperm.xlu0 %1050, %v938
        %v1052 = vpop.permute.xlu0 %1051
        %1053 = vset.pattern.permute.xlu0 0
        %1054 = vperm.xlu0 %1053, %v939
        %v1055 = vpop.permute.xlu0 %1054
        %1056 = vset.pattern.permute.xlu0 0
        %1057 = vperm.xlu0 %1056, %v940
        %v1058 = vpop.permute.xlu0 %1057
        %1059 = vset.pattern.permute.xlu0 0
        %1060 = vperm.xlu0 %1059, %v941
        %v1061 = vpop.permute.xlu0 %1060
        %1062 = vset.pattern.permute.xlu0 0
        %1063 = vperm.xlu0 %1062, %v942
        %v1064 = vpop.permute.xlu0 %1063
        %1065 = vset.pattern.permute.xlu0 0
        %1066 = vperm.xlu0 %1065, %v943
        %v1067 = vpop.permute.xlu0 %1066
        %1068 = vset.pattern.permute.xlu0 0
        %1069 = vperm.xlu0 %1068, %v944
        %v1070 = vpop.permute.xlu0 %1069
        %1071 = vset.pattern.permute.xlu0 0
        %1072 = vperm.xlu0 %1071, %v945
        %v1073 = vpop.permute.xlu0 %1072
        %1074 = vset.pattern.permute.xlu0 0
        %1075 = vperm.xlu0 %1074, %v946
        %v1076 = vpop.permute.xlu0 %1075
        %1077 = vset.pattern.permute.xlu0 0
        %1078 = vperm.xlu0 %1077, %v947
        %v1079 = vpop.permute.xlu0 %1078
        %1080 = vset.pattern.permute.xlu0 0
        %1081 = vperm.xlu0 %1080, %v948
        %v1082 = vpop.permute.xlu0 %1081
        %1083 = vset.pattern.permute.xlu0 0
        %1084 = vperm.xlu0 %1083, %v949
        %v1085 = vpop.permute.xlu0 %1084
        %1086 = vset.pattern.permute.xlu0 0
        %1087 = vperm.xlu0 %1086, %v950
        %v1088 = vpop.permute.xlu0 %1087
        %1089 = vset.pattern.permute.xlu0 0
        %1090 = vperm.xlu0 %1089, %v951
        %v1091 = vpop.permute.xlu0 %1090
        %1092 = vset.pattern.permute.xlu0 0
        %1093 = vperm.xlu0 %1092, %v952
        %v1094 = vpop.permute.xlu0 %1093
        %1095 = vset.pattern.permute.xlu0 0
        %1096 = vperm.xlu0 %1095, %v953
        %v1097 = vpop.permute.xlu0 %1096
        %1098 = vset.pattern.permute.xlu0 0
        %1099 = vperm.xlu0 %1098, %v954
        %v1100 = vpop.permute.xlu0 %1099
        %1101 = vset.pattern.permute.xlu0 0
        %1102 = vperm.xlu0 %1101, %v955
        %v1103 = vpop.permute.xlu0 %1102
        %1104 = vset.pattern.permute.xlu0 0
        %1105 = vperm.xlu0 %1104, %v956
        %v1106 = vpop.permute.xlu0 %1105
        %1107 = vset.pattern.permute.xlu0 0
        %1108 = vperm.xlu0 %1107, %v957
        %v1109 = vpop.permute.xlu0 %1108
        %1110 = vset.pattern.permute.xlu0 0
        %1111 = vperm.xlu0 %1110, %v958
        %v1112 = vpop.permute.xlu0 %1111
        %1113 = vset.pattern.permute.xlu0 0
        %1114 = vperm.xlu0 %1113, %v959
        %v1115 = vpop.permute.xlu0 %1114
        %1116 = vset.pattern.permute.xlu0 0
        %1117 = vperm.xlu0 %1116, %v960
        %v1118 = vpop.permute.xlu0 %1117
        %1119 = vset.pattern.permute.xlu0 0
        %1120 = vperm.xlu0 %1119, %v961
        %v1121 = vpop.permute.xlu0 %1120
        %1122 = vset.pattern.permute.xlu0 0
        %1123 = vperm.xlu0 %1122, %v962
        %v1124 = vpop.permute.xlu0 %1123
        %1125 = vset.pattern.permute.xlu0 0
        %1126 = vperm.xlu0 %1125, %v963
        %v1127 = vpop.permute.xlu0 %1126
        %1128 = vset.pattern.permute.xlu0 0
        %1129 = vperm.xlu0 %1128, %v964
        %v1130 = vpop.permute.xlu0 %1129
        %1131 = vset.pattern.permute.xlu0 0
        %1132 = vperm.xlu0 %1131, %v965
        %v1133 = vpop.permute.xlu0 %1132
        %1134 = vset.pattern.permute.xlu0 0
        %1135 = vperm.xlu0 %1134, %v966
        %v1136 = vpop.permute.xlu0 %1135
        %1137 = vset.pattern.permute.xlu0 0
        %1138 = vperm.xlu0 %1137, %v967
        %v1139 = vpop.permute.xlu0 %1138
        %1140 = vset.pattern.permute.xlu0 0
        %1141 = vperm.xlu0 %1140, %v968
        %v1142 = vpop.permute.xlu0 %1141
        %1143 = vset.pattern.permute.xlu0 0
        %1144 = vperm.xlu0 %1143, %v969
        %v1145 = vpop.permute.xlu0 %1144
        %1146 = vset.pattern.permute.xlu0 0
        %1147 = vperm.xlu0 %1146, %v970
        %v1148 = vpop.permute.xlu0 %1147
        %1149 = vset.pattern.permute.xlu0 0
        %1150 = vperm.xlu0 %1149, %v971
        %v1151 = vpop.permute.xlu0 %1150
        %1152 = vset.pattern.permute.xlu0 0
        %1153 = vperm.xlu0 %1152, %v972
        %v1154 = vpop.permute.xlu0 %1153
        %1155 = vset.pattern.permute.xlu0 0
        %1156 = vperm.xlu0 %1155, %v973
        %v1157 = vpop.permute.xlu0 %1156
        %1158 = vset.pattern.permute.xlu0 0
        %1159 = vperm.xlu0 %1158, %v974
        %v1160 = vpop.permute.xlu0 %1159
        %1161 = vset.pattern.permute.xlu0 0
        %1162 = vperm.xlu0 %1161, %v975
        %v1163 = vpop.permute.xlu0 %1162
        %1164 = vset.pattern.permute.xlu0 0
        %1165 = vperm.xlu0 %1164, %v976
        %v1166 = vpop.permute.xlu0 %1165
        %1167 = vset.pattern.permute.xlu0 0
        %1168 = vperm.xlu0 %1167, %v977
        %v1169 = vpop.permute.xlu0 %1168
        %vm1170 = vcmp.eq.s32.totalorder %v980, 1
        %vm1171 = vcmp.eq.s32.totalorder %v983, 1
        %vm1172 = vcmp.eq.s32.totalorder %v986, 1
        %vm1173 = vcmp.eq.s32.totalorder %v989, 1
        %vm1174 = vcmp.eq.s32.totalorder %v992, 1
        %vm1175 = vcmp.eq.s32.totalorder %v995, 1
        %vm1176 = vcmp.eq.s32.totalorder %v998, 1
        %vm1177 = vcmp.eq.s32.totalorder %v1001, 1
        %vm1178 = vcmp.eq.s32.totalorder %v1004, 1
        %vm1179 = vcmp.eq.s32.totalorder %v1007, 1
        %vm1180 = vcmp.eq.s32.totalorder %v1010, 1
        %vm1181 = vcmp.eq.s32.totalorder %v1013, 1
        %vm1182 = vcmp.eq.s32.totalorder %v1016, 1
        %vm1183 = vcmp.eq.s32.totalorder %v1019, 1
        %vm1184 = vcmp.eq.s32.totalorder %v1022, 1
        %vm1185 = vcmp.eq.s32.totalorder %v1025, 1
        %vm1186 = vcmp.eq.s32.totalorder %v1028, 1
        %vm1187 = vcmp.eq.s32.totalorder %v1031, 1
        %vm1188 = vcmp.eq.s32.totalorder %v1034, 1
        %vm1189 = vcmp.eq.s32.totalorder %v1037, 1
        %vm1190 = vcmp.eq.s32.totalorder %v1040, 1
        %vm1191 = vcmp.eq.s32.totalorder %v1043, 1
        %vm1192 = vcmp.eq.s32.totalorder %v1046, 1
        %vm1193 = vcmp.eq.s32.totalorder %v1049, 1
        %vm1194 = vcmp.eq.s32.totalorder %v1052, 1
        %vm1195 = vcmp.eq.s32.totalorder %v1055, 1
        %vm1196 = vcmp.eq.s32.totalorder %v1058, 1
        %vm1197 = vcmp.eq.s32.totalorder %v1061, 1
        %vm1198 = vcmp.eq.s32.totalorder %v1064, 1
        %vm1199 = vcmp.eq.s32.totalorder %v1067, 1
        %vm1200 = vcmp.eq.s32.totalorder %v1070, 1
        %vm1201 = vcmp.eq.s32.totalorder %v1073, 1
        %vm1202 = vcmp.eq.s32.totalorder %v1076, 1
        %vm1203 = vcmp.eq.s32.totalorder %v1079, 1
        %vm1204 = vcmp.eq.s32.totalorder %v1082, 1
        %vm1205 = vcmp.eq.s32.totalorder %v1085, 1
        %vm1206 = vcmp.eq.s32.totalorder %v1088, 1
        %vm1207 = vcmp.eq.s32.totalorder %v1091, 1
        %vm1208 = vcmp.eq.s32.totalorder %v1094, 1
        %vm1209 = vcmp.eq.s32.totalorder %v1097, 1
        %vm1210 = vcmp.eq.s32.totalorder %v1100, 1
        %vm1211 = vcmp.eq.s32.totalorder %v1103, 1
        %vm1212 = vcmp.eq.s32.totalorder %v1106, 1
        %vm1213 = vcmp.eq.s32.totalorder %v1109, 1
        %vm1214 = vcmp.eq.s32.totalorder %v1112, 1
        %vm1215 = vcmp.eq.s32.totalorder %v1115, 1
        %vm1216 = vcmp.eq.s32.totalorder %v1118, 1
        %vm1217 = vcmp.eq.s32.totalorder %v1121, 1
        %vm1218 = vcmp.eq.s32.totalorder %v1124, 1
        %vm1219 = vcmp.eq.s32.totalorder %v1127, 1
        %vm1220 = vcmp.eq.s32.totalorder %v1130, 1
        %vm1221 = vcmp.eq.s32.totalorder %v1133, 1
        %vm1222 = vcmp.eq.s32.totalorder %v1136, 1
        %vm1223 = vcmp.eq.s32.totalorder %v1139, 1
        %vm1224 = vcmp.eq.s32.totalorder %v1142, 1
        %vm1225 = vcmp.eq.s32.totalorder %v1145, 1
        %vm1226 = vcmp.eq.s32.totalorder %v1148, 1
        %vm1227 = vcmp.eq.s32.totalorder %v1151, 1
        %vm1228 = vcmp.eq.s32.totalorder %v1154, 1
        %vm1229 = vcmp.eq.s32.totalorder %v1157, 1
        %vm1230 = vcmp.eq.s32.totalorder %v1160, 1
        %vm1231 = vcmp.eq.s32.totalorder %v1163, 1
        %vm1232 = vcmp.eq.s32.totalorder %v1166, 1
        %vm1233 = vcmp.eq.s32.totalorder %v1169, 1
        %v1234 = vsel %vm1170, %v268, 0.0
        %v1235 = vsel %vm1170, %v269, 0.0
        %v1236 = vsel %vm1171, %v270, 0.0
        %v1237 = vsel %vm1171, %v271, 0.0
        %v1238 = vsel %vm1172, %v272, 0.0
        %v1239 = vsel %vm1172, %v273, 0.0
        %v1240 = vsel %vm1173, %v274, 0.0
        %v1241 = vsel %vm1173, %v275, 0.0
        %v1242 = vsel %vm1174, %v276, 0.0
        %v1243 = vsel %vm1174, %v277, 0.0
        %v1244 = vsel %vm1175, %v278, 0.0
        %v1245 = vsel %vm1175, %v279, 0.0
        %v1246 = vsel %vm1176, %v280, 0.0
        %v1247 = vsel %vm1176, %v281, 0.0
        %v1248 = vsel %vm1177, %v282, 0.0
        %v1249 = vsel %vm1177, %v283, 0.0
        %v1250 = vsel %vm1178, %v284, 0.0
        %v1251 = vsel %vm1178, %v285, 0.0
        %v1252 = vsel %vm1179, %v286, 0.0
        %v1253 = vsel %vm1179, %v287, 0.0
        %v1254 = vsel %vm1180, %v288, 0.0
        %v1255 = vsel %vm1180, %v289, 0.0
        %v1256 = vsel %vm1181, %v290, 0.0
        %v1257 = vsel %vm1181, %v291, 0.0
        %v1258 = vsel %vm1182, %v292, 0.0
        %v1259 = vsel %vm1182, %v293, 0.0
        %v1260 = vsel %vm1183, %v294, 0.0
        %v1261 = vsel %vm1183, %v295, 0.0
        %v1262 = vsel %vm1184, %v296, 0.0
        %v1263 = vsel %vm1184, %v297, 0.0
        %v1264 = vsel %vm1185, %v298, 0.0
        %v1265 = vsel %vm1185, %v299, 0.0
        %v1266 = vsel %vm1186, %v300, 0.0
        %v1267 = vsel %vm1186, %v301, 0.0
        %v1268 = vsel %vm1187, %v302, 0.0
        %v1269 = vsel %vm1187, %v303, 0.0
        %v1270 = vsel %vm1188, %v304, 0.0
        %v1271 = vsel %vm1188, %v305, 0.0
        %v1272 = vsel %vm1189, %v306, 0.0
        %v1273 = vsel %vm1189, %v307, 0.0
        %v1274 = vsel %vm1190, %v308, 0.0
        %v1275 = vsel %vm1190, %v309, 0.0
        %v1276 = vsel %vm1191, %v310, 0.0
        %v1277 = vsel %vm1191, %v311, 0.0
        %v1278 = vsel %vm1192, %v312, 0.0
        %v1279 = vsel %vm1192, %v313, 0.0
        %v1280 = vsel %vm1193, %v314, 0.0
        %v1281 = vsel %vm1193, %v315, 0.0
        %v1282 = vsel %vm1194, %v316, 0.0
        %v1283 = vsel %vm1194, %v317, 0.0
        %v1284 = vsel %vm1195, %v318, 0.0
        %v1285 = vsel %vm1195, %v319, 0.0
        %v1286 = vsel %vm1196, %v320, 0.0
        %v1287 = vsel %vm1196, %v321, 0.0
        %v1288 = vsel %vm1197, %v322, 0.0
        %v1289 = vsel %vm1197, %v323, 0.0
        %v1290 = vsel %vm1198, %v324, 0.0
        %v1291 = vsel %vm1198, %v325, 0.0
        %v1292 = vsel %vm1199, %v326, 0.0
        %v1293 = vsel %vm1199, %v327, 0.0
        %v1294 = vsel %vm1200, %v328, 0.0
        %v1295 = vsel %vm1200, %v329, 0.0
        %v1296 = vsel %vm1201, %v330, 0.0
        %v1297 = vsel %vm1201, %v331, 0.0
        %v1298 = vsel %vm1202, %v332, 0.0
        %v1299 = vsel %vm1202, %v333, 0.0
        %v1300 = vsel %vm1203, %v334, 0.0
        %v1301 = vsel %vm1203, %v335, 0.0
        %v1302 = vsel %vm1204, %v336, 0.0
        %v1303 = vsel %vm1204, %v337, 0.0
        %v1304 = vsel %vm1205, %v338, 0.0
        %v1305 = vsel %vm1205, %v339, 0.0
        %v1306 = vsel %vm1206, %v340, 0.0
        %v1307 = vsel %vm1206, %v341, 0.0
        %v1308 = vsel %vm1207, %v342, 0.0
        %v1309 = vsel %vm1207, %v343, 0.0
        %v1310 = vsel %vm1208, %v344, 0.0
        %v1311 = vsel %vm1208, %v345, 0.0
        %v1312 = vsel %vm1209, %v346, 0.0
        %v1313 = vsel %vm1209, %v347, 0.0
        %v1314 = vsel %vm1210, %v348, 0.0
        %v1315 = vsel %vm1210, %v349, 0.0
        %v1316 = vsel %vm1211, %v350, 0.0
        %v1317 = vsel %vm1211, %v351, 0.0
        %v1318 = vsel %vm1212, %v352, 0.0
        %v1319 = vsel %vm1212, %v353, 0.0
        %v1320 = vsel %vm1213, %v354, 0.0
        %v1321 = vsel %vm1213, %v355, 0.0
        %v1322 = vsel %vm1214, %v356, 0.0
        %v1323 = vsel %vm1214, %v357, 0.0
        %v1324 = vsel %vm1215, %v358, 0.0
        %v1325 = vsel %vm1215, %v359, 0.0
        %v1326 = vsel %vm1216, %v360, 0.0
        %v1327 = vsel %vm1216, %v361, 0.0
        %v1328 = vsel %vm1217, %v362, 0.0
        %v1329 = vsel %vm1217, %v363, 0.0
        %v1330 = vsel %vm1218, %v364, 0.0
        %v1331 = vsel %vm1218, %v365, 0.0
        %v1332 = vsel %vm1219, %v366, 0.0
        %v1333 = vsel %vm1219, %v367, 0.0
        %v1334 = vsel %vm1220, %v368, 0.0
        %v1335 = vsel %vm1220, %v369, 0.0
        %v1336 = vsel %vm1221, %v370, 0.0
        %v1337 = vsel %vm1221, %v371, 0.0
        %v1338 = vsel %vm1222, %v372, 0.0
        %v1339 = vsel %vm1222, %v373, 0.0
        %v1340 = vsel %vm1223, %v374, 0.0
        %v1341 = vsel %vm1223, %v375, 0.0
        %v1342 = vsel %vm1224, %v376, 0.0
        %v1343 = vsel %vm1224, %v377, 0.0
        %v1344 = vsel %vm1225, %v378, 0.0
        %v1345 = vsel %vm1225, %v379, 0.0
        %v1346 = vsel %vm1226, %v380, 0.0
        %v1347 = vsel %vm1226, %v381, 0.0
        %v1348 = vsel %vm1227, %v382, 0.0
        %v1349 = vsel %vm1227, %v383, 0.0
        %v1350 = vsel %vm1228, %v384, 0.0
        %v1351 = vsel %vm1228, %v385, 0.0
        %v1352 = vsel %vm1229, %v386, 0.0
        %v1353 = vsel %vm1229, %v387, 0.0
        %v1354 = vsel %vm1230, %v388, 0.0
        %v1355 = vsel %vm1230, %v389, 0.0
        %v1356 = vsel %vm1231, %v390, 0.0
        %v1357 = vsel %vm1231, %v391, 0.0
        %v1358 = vsel %vm1232, %v392, 0.0
        %v1359 = vsel %vm1232, %v393, 0.0
        %v1360 = vsel %vm1233, %v394, 0.0
        %v1361 = vsel %vm1233, %v395, 0.0
        %1362 = vset.pattern.permute.xlu0 1
        %1363 = vperm.xlu0 %1362, %v914
        %v1364 = vpop.permute.xlu0 %1363
        %1365 = vset.pattern.permute.xlu0 1
        %1366 = vperm.xlu0 %1365, %v915
        %v1367 = vpop.permute.xlu0 %1366
        %1368 = vset.pattern.permute.xlu0 1
        %1369 = vperm.xlu0 %1368, %v916
        %v1370 = vpop.permute.xlu0 %1369
        %1371 = vset.pattern.permute.xlu0 1
        %1372 = vperm.xlu0 %1371, %v917
        %v1373 = vpop.permute.xlu0 %1372
        %1374 = vset.pattern.permute.xlu0 1
        %1375 = vperm.xlu0 %1374, %v918
        %v1376 = vpop.permute.xlu0 %1375
        %1377 = vset.pattern.permute.xlu0 1
        %1378 = vperm.xlu0 %1377, %v919
        %v1379 = vpop.permute.xlu0 %1378
        %1380 = vset.pattern.permute.xlu0 1
        %1381 = vperm.xlu0 %1380, %v920
        %v1382 = vpop.permute.xlu0 %1381
        %1383 = vset.pattern.permute.xlu0 1
        %1384 = vperm.xlu0 %1383, %v921
        %v1385 = vpop.permute.xlu0 %1384
        %1386 = vset.pattern.permute.xlu0 1
        %1387 = vperm.xlu0 %1386, %v922
        %v1388 = vpop.permute.xlu0 %1387
        %1389 = vset.pattern.permute.xlu0 1
        %1390 = vperm.xlu0 %1389, %v923
        %v1391 = vpop.permute.xlu0 %1390
        %1392 = vset.pattern.permute.xlu0 1
        %1393 = vperm.xlu0 %1392, %v924
        %v1394 = vpop.permute.xlu0 %1393
        %1395 = vset.pattern.permute.xlu0 1
        %1396 = vperm.xlu0 %1395, %v925
        %v1397 = vpop.permute.xlu0 %1396
        %1398 = vset.pattern.permute.xlu0 1
        %1399 = vperm.xlu0 %1398, %v926
        %v1400 = vpop.permute.xlu0 %1399
        %1401 = vset.pattern.permute.xlu0 1
        %1402 = vperm.xlu0 %1401, %v927
        %v1403 = vpop.permute.xlu0 %1402
        %1404 = vset.pattern.permute.xlu0 1
        %1405 = vperm.xlu0 %1404, %v928
        %v1406 = vpop.permute.xlu0 %1405
        %1407 = vset.pattern.permute.xlu0 1
        %1408 = vperm.xlu0 %1407, %v929
        %v1409 = vpop.permute.xlu0 %1408
        %1410 = vset.pattern.permute.xlu0 1
        %1411 = vperm.xlu0 %1410, %v930
        %v1412 = vpop.permute.xlu0 %1411
        %1413 = vset.pattern.permute.xlu0 1
        %1414 = vperm.xlu0 %1413, %v931
        %v1415 = vpop.permute.xlu0 %1414
        %1416 = vset.pattern.permute.xlu0 1
        %1417 = vperm.xlu0 %1416, %v932
        %v1418 = vpop.permute.xlu0 %1417
        %1419 = vset.pattern.permute.xlu0 1
        %1420 = vperm.xlu0 %1419, %v933
        %v1421 = vpop.permute.xlu0 %1420
        %1422 = vset.pattern.permute.xlu0 1
        %1423 = vperm.xlu0 %1422, %v934
        %v1424 = vpop.permute.xlu0 %1423
        %1425 = vset.pattern.permute.xlu0 1
        %1426 = vperm.xlu0 %1425, %v935
        %v1427 = vpop.permute.xlu0 %1426
        %1428 = vset.pattern.permute.xlu0 1
        %1429 = vperm.xlu0 %1428, %v936
        %v1430 = vpop.permute.xlu0 %1429
        %1431 = vset.pattern.permute.xlu0 1
        %1432 = vperm.xlu0 %1431, %v937
        %v1433 = vpop.permute.xlu0 %1432
        %1434 = vset.pattern.permute.xlu0 1
        %1435 = vperm.xlu0 %1434, %v938
        %v1436 = vpop.permute.xlu0 %1435
        %1437 = vset.pattern.permute.xlu0 1
        %1438 = vperm.xlu0 %1437, %v939
        %v1439 = vpop.permute.xlu0 %1438
        %1440 = vset.pattern.permute.xlu0 1
        %1441 = vperm.xlu0 %1440, %v940
        %v1442 = vpop.permute.xlu0 %1441
        %1443 = vset.pattern.permute.xlu0 1
        %1444 = vperm.xlu0 %1443, %v941
        %v1445 = vpop.permute.xlu0 %1444
        %1446 = vset.pattern.permute.xlu0 1
        %1447 = vperm.xlu0 %1446, %v942
        %v1448 = vpop.permute.xlu0 %1447
        %1449 = vset.pattern.permute.xlu0 1
        %1450 = vperm.xlu0 %1449, %v943
        %v1451 = vpop.permute.xlu0 %1450
        %1452 = vset.pattern.permute.xlu0 1
        %1453 = vperm.xlu0 %1452, %v944
        %v1454 = vpop.permute.xlu0 %1453
        %1455 = vset.pattern.permute.xlu0 1
        %1456 = vperm.xlu0 %1455, %v945
        %v1457 = vpop.permute.xlu0 %1456
        %1458 = vset.pattern.permute.xlu0 1
        %1459 = vperm.xlu0 %1458, %v946
        %v1460 = vpop.permute.xlu0 %1459
        %1461 = vset.pattern.permute.xlu0 1
        %1462 = vperm.xlu0 %1461, %v947
        %v1463 = vpop.permute.xlu0 %1462
        %1464 = vset.pattern.permute.xlu0 1
        %1465 = vperm.xlu0 %1464, %v948
        %v1466 = vpop.permute.xlu0 %1465
        %1467 = vset.pattern.permute.xlu0 1
        %1468 = vperm.xlu0 %1467, %v949
        %v1469 = vpop.permute.xlu0 %1468
        %1470 = vset.pattern.permute.xlu0 1
        %1471 = vperm.xlu0 %1470, %v950
        %v1472 = vpop.permute.xlu0 %1471
        %1473 = vset.pattern.permute.xlu0 1
        %1474 = vperm.xlu0 %1473, %v951
        %v1475 = vpop.permute.xlu0 %1474
        %1476 = vset.pattern.permute.xlu0 1
        %1477 = vperm.xlu0 %1476, %v952
        %v1478 = vpop.permute.xlu0 %1477
        %1479 = vset.pattern.permute.xlu0 1
        %1480 = vperm.xlu0 %1479, %v953
        %v1481 = vpop.permute.xlu0 %1480
        %1482 = vset.pattern.permute.xlu0 1
        %1483 = vperm.xlu0 %1482, %v954
        %v1484 = vpop.permute.xlu0 %1483
        %1485 = vset.pattern.permute.xlu0 1
        %1486 = vperm.xlu0 %1485, %v955
        %v1487 = vpop.permute.xlu0 %1486
        %1488 = vset.pattern.permute.xlu0 1
        %1489 = vperm.xlu0 %1488, %v956
        %v1490 = vpop.permute.xlu0 %1489
        %1491 = vset.pattern.permute.xlu0 1
        %1492 = vperm.xlu0 %1491, %v957
        %v1493 = vpop.permute.xlu0 %1492
        %1494 = vset.pattern.permute.xlu0 1
        %1495 = vperm.xlu0 %1494, %v958
        %v1496 = vpop.permute.xlu0 %1495
        %1497 = vset.pattern.permute.xlu0 1
        %1498 = vperm.xlu0 %1497, %v959
        %v1499 = vpop.permute.xlu0 %1498
        %1500 = vset.pattern.permute.xlu0 1
        %1501 = vperm.xlu0 %1500, %v960
        %v1502 = vpop.permute.xlu0 %1501
        %1503 = vset.pattern.permute.xlu0 1
        %1504 = vperm.xlu0 %1503, %v961
        %v1505 = vpop.permute.xlu0 %1504
        %1506 = vset.pattern.permute.xlu0 1
        %1507 = vperm.xlu0 %1506, %v962
        %v1508 = vpop.permute.xlu0 %1507
        %1509 = vset.pattern.permute.xlu0 1
        %1510 = vperm.xlu0 %1509, %v963
        %v1511 = vpop.permute.xlu0 %1510
        %1512 = vset.pattern.permute.xlu0 1
        %1513 = vperm.xlu0 %1512, %v964
        %v1514 = vpop.permute.xlu0 %1513
        %1515 = vset.pattern.permute.xlu0 1
        %1516 = vperm.xlu0 %1515, %v965
        %v1517 = vpop.permute.xlu0 %1516
        %1518 = vset.pattern.permute.xlu0 1
        %1519 = vperm.xlu0 %1518, %v966
        %v1520 = vpop.permute.xlu0 %1519
        %1521 = vset.pattern.permute.xlu0 1
        %1522 = vperm.xlu0 %1521, %v967
        %v1523 = vpop.permute.xlu0 %1522
        %1524 = vset.pattern.permute.xlu0 1
        %1525 = vperm.xlu0 %1524, %v968
        %v1526 = vpop.permute.xlu0 %1525
        %1527 = vset.pattern.permute.xlu0 1
        %1528 = vperm.xlu0 %1527, %v969
        %v1529 = vpop.permute.xlu0 %1528
        %1530 = vset.pattern.permute.xlu0 1
        %1531 = vperm.xlu0 %1530, %v970
        %v1532 = vpop.permute.xlu0 %1531
        %1533 = vset.pattern.permute.xlu0 1
        %1534 = vperm.xlu0 %1533, %v971
        %v1535 = vpop.permute.xlu0 %1534
        %1536 = vset.pattern.permute.xlu0 1
        %1537 = vperm.xlu0 %1536, %v972
        %v1538 = vpop.permute.xlu0 %1537
        %1539 = vset.pattern.permute.xlu0 1
        %1540 = vperm.xlu0 %1539, %v973
        %v1541 = vpop.permute.xlu0 %1540
        %1542 = vset.pattern.permute.xlu0 1
        %1543 = vperm.xlu0 %1542, %v974
        %v1544 = vpop.permute.xlu0 %1543
        %1545 = vset.pattern.permute.xlu0 1
        %1546 = vperm.xlu0 %1545, %v975
        %v1547 = vpop.permute.xlu0 %1546
        %1548 = vset.pattern.permute.xlu0 1
        %1549 = vperm.xlu0 %1548, %v976
        %v1550 = vpop.permute.xlu0 %1549
        %1551 = vset.pattern.permute.xlu0 1
        %1552 = vperm.xlu0 %1551, %v977
        %v1553 = vpop.permute.xlu0 %1552
        %vm1554 = vcmp.eq.s32.totalorder %v1364, 1
        %vm1555 = vcmp.eq.s32.totalorder %v1367, 1
        %vm1556 = vcmp.eq.s32.totalorder %v1370, 1
        %vm1557 = vcmp.eq.s32.totalorder %v1373, 1
        %vm1558 = vcmp.eq.s32.totalorder %v1376, 1
        %vm1559 = vcmp.eq.s32.totalorder %v1379, 1
        %vm1560 = vcmp.eq.s32.totalorder %v1382, 1
        %vm1561 = vcmp.eq.s32.totalorder %v1385, 1
        %vm1562 = vcmp.eq.s32.totalorder %v1388, 1
        %vm1563 = vcmp.eq.s32.totalorder %v1391, 1
        %vm1564 = vcmp.eq.s32.totalorder %v1394, 1
        %vm1565 = vcmp.eq.s32.totalorder %v1397, 1
        %vm1566 = vcmp.eq.s32.totalorder %v1400, 1
        %vm1567 = vcmp.eq.s32.totalorder %v1403, 1
        %vm1568 = vcmp.eq.s32.totalorder %v1406, 1
        %vm1569 = vcmp.eq.s32.totalorder %v1409, 1
        %vm1570 = vcmp.eq.s32.totalorder %v1412, 1
        %vm1571 = vcmp.eq.s32.totalorder %v1415, 1
        %vm1572 = vcmp.eq.s32.totalorder %v1418, 1
        %vm1573 = vcmp.eq.s32.totalorder %v1421, 1
        %vm1574 = vcmp.eq.s32.totalorder %v1424, 1
        %vm1575 = vcmp.eq.s32.totalorder %v1427, 1
        %vm1576 = vcmp.eq.s32.totalorder %v1430, 1
        %vm1577 = vcmp.eq.s32.totalorder %v1433, 1
        %vm1578 = vcmp.eq.s32.totalorder %v1436, 1
        %vm1579 = vcmp.eq.s32.totalorder %v1439, 1
        %vm1580 = vcmp.eq.s32.totalorder %v1442, 1
        %vm1581 = vcmp.eq.s32.totalorder %v1445, 1
        %vm1582 = vcmp.eq.s32.totalorder %v1448, 1
        %vm1583 = vcmp.eq.s32.totalorder %v1451, 1
        %vm1584 = vcmp.eq.s32.totalorder %v1454, 1
        %vm1585 = vcmp.eq.s32.totalorder %v1457, 1
        %vm1586 = vcmp.eq.s32.totalorder %v1460, 1
        %vm1587 = vcmp.eq.s32.totalorder %v1463, 1
        %vm1588 = vcmp.eq.s32.totalorder %v1466, 1
        %vm1589 = vcmp.eq.s32.totalorder %v1469, 1
        %vm1590 = vcmp.eq.s32.totalorder %v1472, 1
        %vm1591 = vcmp.eq.s32.totalorder %v1475, 1
        %vm1592 = vcmp.eq.s32.totalorder %v1478, 1
        %vm1593 = vcmp.eq.s32.totalorder %v1481, 1
        %vm1594 = vcmp.eq.s32.totalorder %v1484, 1
        %vm1595 = vcmp.eq.s32.totalorder %v1487, 1
        %vm1596 = vcmp.eq.s32.totalorder %v1490, 1
        %vm1597 = vcmp.eq.s32.totalorder %v1493, 1
        %vm1598 = vcmp.eq.s32.totalorder %v1496, 1
        %vm1599 = vcmp.eq.s32.totalorder %v1499, 1
        %vm1600 = vcmp.eq.s32.totalorder %v1502, 1
        %vm1601 = vcmp.eq.s32.totalorder %v1505, 1
        %vm1602 = vcmp.eq.s32.totalorder %v1508, 1
        %vm1603 = vcmp.eq.s32.totalorder %v1511, 1
        %vm1604 = vcmp.eq.s32.totalorder %v1514, 1
        %vm1605 = vcmp.eq.s32.totalorder %v1517, 1
        %vm1606 = vcmp.eq.s32.totalorder %v1520, 1
        %vm1607 = vcmp.eq.s32.totalorder %v1523, 1
        %vm1608 = vcmp.eq.s32.totalorder %v1526, 1
        %vm1609 = vcmp.eq.s32.totalorder %v1529, 1
        %vm1610 = vcmp.eq.s32.totalorder %v1532, 1
        %vm1611 = vcmp.eq.s32.totalorder %v1535, 1
        %vm1612 = vcmp.eq.s32.totalorder %v1538, 1
        %vm1613 = vcmp.eq.s32.totalorder %v1541, 1
        %vm1614 = vcmp.eq.s32.totalorder %v1544, 1
        %vm1615 = vcmp.eq.s32.totalorder %v1547, 1
        %vm1616 = vcmp.eq.s32.totalorder %v1550, 1
        %vm1617 = vcmp.eq.s32.totalorder %v1553, 1
        %v1618 = vsel %vm1554, %v268, 0.0
        %v1619 = vsel %vm1554, %v269, 0.0
        %v1620 = vsel %vm1555, %v270, 0.0
        %v1621 = vsel %vm1555, %v271, 0.0
        %v1622 = vsel %vm1556, %v272, 0.0
        %v1623 = vsel %vm1556, %v273, 0.0
        %v1624 = vsel %vm1557, %v274, 0.0
        %v1625 = vsel %vm1557, %v275, 0.0
        %v1626 = vsel %vm1558, %v276, 0.0
        %v1627 = vsel %vm1558, %v277, 0.0
        %v1628 = vsel %vm1559, %v278, 0.0
        %v1629 = vsel %vm1559, %v279, 0.0
        %v1630 = vsel %vm1560, %v280, 0.0
        %v1631 = vsel %vm1560, %v281, 0.0
        %v1632 = vsel %vm1561, %v282, 0.0
        %v1633 = vsel %vm1561, %v283, 0.0
        %v1634 = vsel %vm1562, %v284, 0.0
        %v1635 = vsel %vm1562, %v285, 0.0
        %v1636 = vsel %vm1563, %v286, 0.0
        %v1637 = vsel %vm1563, %v287, 0.0
        %v1638 = vsel %vm1564, %v288, 0.0
        %v1639 = vsel %vm1564, %v289, 0.0
        %v1640 = vsel %vm1565, %v290, 0.0
        %v1641 = vsel %vm1565, %v291, 0.0
        %v1642 = vsel %vm1566, %v292, 0.0
        %v1643 = vsel %vm1566, %v293, 0.0
        %v1644 = vsel %vm1567, %v294, 0.0
        %v1645 = vsel %vm1567, %v295, 0.0
        %v1646 = vsel %vm1568, %v296, 0.0
        %v1647 = vsel %vm1568, %v297, 0.0
        %v1648 = vsel %vm1569, %v298, 0.0
        %v1649 = vsel %vm1569, %v299, 0.0
        %v1650 = vsel %vm1570, %v300, 0.0
        %v1651 = vsel %vm1570, %v301, 0.0
        %v1652 = vsel %vm1571, %v302, 0.0
        %v1653 = vsel %vm1571, %v303, 0.0
        %v1654 = vsel %vm1572, %v304, 0.0
        %v1655 = vsel %vm1572, %v305, 0.0
        %v1656 = vsel %vm1573, %v306, 0.0
        %v1657 = vsel %vm1573, %v307, 0.0
        %v1658 = vsel %vm1574, %v308, 0.0
        %v1659 = vsel %vm1574, %v309, 0.0
        %v1660 = vsel %vm1575, %v310, 0.0
        %v1661 = vsel %vm1575, %v311, 0.0
        %v1662 = vsel %vm1576, %v312, 0.0
        %v1663 = vsel %vm1576, %v313, 0.0
        %v1664 = vsel %vm1577, %v314, 0.0
        %v1665 = vsel %vm1577, %v315, 0.0
        %v1666 = vsel %vm1578, %v316, 0.0
        %v1667 = vsel %vm1578, %v317, 0.0
        %v1668 = vsel %vm1579, %v318, 0.0
        %v1669 = vsel %vm1579, %v319, 0.0
        %v1670 = vsel %vm1580, %v320, 0.0
        %v1671 = vsel %vm1580, %v321, 0.0
        %v1672 = vsel %vm1581, %v322, 0.0
        %v1673 = vsel %vm1581, %v323, 0.0
        %v1674 = vsel %vm1582, %v324, 0.0
        %v1675 = vsel %vm1582, %v325, 0.0
        %v1676 = vsel %vm1583, %v326, 0.0
        %v1677 = vsel %vm1583, %v327, 0.0
        %v1678 = vsel %vm1584, %v328, 0.0
        %v1679 = vsel %vm1584, %v329, 0.0
        %v1680 = vsel %vm1585, %v330, 0.0
        %v1681 = vsel %vm1585, %v331, 0.0
        %v1682 = vsel %vm1586, %v332, 0.0
        %v1683 = vsel %vm1586, %v333, 0.0
        %v1684 = vsel %vm1587, %v334, 0.0
        %v1685 = vsel %vm1587, %v335, 0.0
        %v1686 = vsel %vm1588, %v336, 0.0
        %v1687 = vsel %vm1588, %v337, 0.0
        %v1688 = vsel %vm1589, %v338, 0.0
        %v1689 = vsel %vm1589, %v339, 0.0
        %v1690 = vsel %vm1590, %v340, 0.0
        %v1691 = vsel %vm1590, %v341, 0.0
        %v1692 = vsel %vm1591, %v342, 0.0
        %v1693 = vsel %vm1591, %v343, 0.0
        %v1694 = vsel %vm1592, %v344, 0.0
        %v1695 = vsel %vm1592, %v345, 0.0
        %v1696 = vsel %vm1593, %v346, 0.0
        %v1697 = vsel %vm1593, %v347, 0.0
        %v1698 = vsel %vm1594, %v348, 0.0
        %v1699 = vsel %vm1594, %v349, 0.0
        %v1700 = vsel %vm1595, %v350, 0.0
        %v1701 = vsel %vm1595, %v351, 0.0
        %v1702 = vsel %vm1596, %v352, 0.0
        %v1703 = vsel %vm1596, %v353, 0.0
        %v1704 = vsel %vm1597, %v354, 0.0
        %v1705 = vsel %vm1597, %v355, 0.0
        %v1706 = vsel %vm1598, %v356, 0.0
        %v1707 = vsel %vm1598, %v357, 0.0
        %v1708 = vsel %vm1599, %v358, 0.0
        %v1709 = vsel %vm1599, %v359, 0.0
        %v1710 = vsel %vm1600, %v360, 0.0
        %v1711 = vsel %vm1600, %v361, 0.0
        %v1712 = vsel %vm1601, %v362, 0.0
        %v1713 = vsel %vm1601, %v363, 0.0
        %v1714 = vsel %vm1602, %v364, 0.0
        %v1715 = vsel %vm1602, %v365, 0.0
        %v1716 = vsel %vm1603, %v366, 0.0
        %v1717 = vsel %vm1603, %v367, 0.0
        %v1718 = vsel %vm1604, %v368, 0.0
        %v1719 = vsel %vm1604, %v369, 0.0
        %v1720 = vsel %vm1605, %v370, 0.0
        %v1721 = vsel %vm1605, %v371, 0.0
        %v1722 = vsel %vm1606, %v372, 0.0
        %v1723 = vsel %vm1606, %v373, 0.0
        %v1724 = vsel %vm1607, %v374, 0.0
        %v1725 = vsel %vm1607, %v375, 0.0
        %v1726 = vsel %vm1608, %v376, 0.0
        %v1727 = vsel %vm1608, %v377, 0.0
        %v1728 = vsel %vm1609, %v378, 0.0
        %v1729 = vsel %vm1609, %v379, 0.0
        %v1730 = vsel %vm1610, %v380, 0.0
        %v1731 = vsel %vm1610, %v381, 0.0
        %v1732 = vsel %vm1611, %v382, 0.0
        %v1733 = vsel %vm1611, %v383, 0.0
        %v1734 = vsel %vm1612, %v384, 0.0
        %v1735 = vsel %vm1612, %v385, 0.0
        %v1736 = vsel %vm1613, %v386, 0.0
        %v1737 = vsel %vm1613, %v387, 0.0
        %v1738 = vsel %vm1614, %v388, 0.0
        %v1739 = vsel %vm1614, %v389, 0.0
        %v1740 = vsel %vm1615, %v390, 0.0
        %v1741 = vsel %vm1615, %v391, 0.0
        %v1742 = vsel %vm1616, %v392, 0.0
        %v1743 = vsel %vm1616, %v393, 0.0
        %v1744 = vsel %vm1617, %v394, 0.0
        %v1745 = vsel %vm1617, %v395, 0.0
        %1746 = vst [vmem:[%s249] sm:$0xff] %v1234
        %1747 = vst [vmem:[%s249 + $0x8] sm:$0xff] %v1235
        %1748 = vst [vmem:[%s249 + $0x10] sm:$0xff] %v1236
        %1749 = vst [vmem:[%s249 + $0x18] sm:$0xff] %v1237
        %1750 = vst [vmem:[%s249 + $0x20] sm:$0xff] %v1238
        %1751 = vst [vmem:[%s249 + $0x28] sm:$0xff] %v1239
        %1752 = vst [vmem:[%s249 + $0x30] sm:$0xff] %v1240
        %1753 = vst [vmem:[%s249 + $0x38] sm:$0xff] %v1241
        %1754 = vst [vmem:[%s249 + $0x40] sm:$0xff] %v1242
        %1755 = vst [vmem:[%s249 + $0x48] sm:$0xff] %v1243
        %1756 = vst [vmem:[%s249 + $0x50] sm:$0xff] %v1244
        %1757 = vst [vmem:[%s249 + $0x58] sm:$0xff] %v1245
        %1758 = vst [vmem:[%s249 + $0x60] sm:$0xff] %v1246
        %1759 = vst [vmem:[%s249 + $0x68] sm:$0xff] %v1247
        %1760 = vst [vmem:[%s249 + $0x70] sm:$0xff] %v1248
        %1761 = vst [vmem:[%s249 + $0x78] sm:$0xff] %v1249
        %1762 = vst [vmem:[%s249 + $0x80] sm:$0xff] %v1250
        %1763 = vst [vmem:[%s249 + $0x88] sm:$0xff] %v1251
        %1764 = vst [vmem:[%s249 + $0x90] sm:$0xff] %v1252
        %1765 = vst [vmem:[%s249 + $0x98] sm:$0xff] %v1253
        %1766 = vst [vmem:[%s249 + $0xa0] sm:$0xff] %v1254
        %1767 = vst [vmem:[%s249 + $0xa8] sm:$0xff] %v1255
        %1768 = vst [vmem:[%s249 + $0xb0] sm:$0xff] %v1256
        %1769 = vst [vmem:[%s249 + $0xb8] sm:$0xff] %v1257
        %1770 = vst [vmem:[%s249 + $0xc0] sm:$0xff] %v1258
        %1771 = vst [vmem:[%s249 + $0xc8] sm:$0xff] %v1259
        %1772 = vst [vmem:[%s249 + $0xd0] sm:$0xff] %v1260
        %1773 = vst [vmem:[%s249 + $0xd8] sm:$0xff] %v1261
        %1774 = vst [vmem:[%s249 + $0xe0] sm:$0xff] %v1262
        %1775 = vst [vmem:[%s249 + $0xe8] sm:$0xff] %v1263
        %1776 = vst [vmem:[%s249 + $0xf0] sm:$0xff] %v1264
        %1777 = vst [vmem:[%s249 + $0xf8] sm:$0xff] %v1265
        %1778 = vst [vmem:[%s249 + $0x100] sm:$0xff] %v1266
        %1779 = vst [vmem:[%s249 + $0x108] sm:$0xff] %v1267
        %1780 = vst [vmem:[%s249 + $0x110] sm:$0xff] %v1268
        %1781 = vst [vmem:[%s249 + $0x118] sm:$0xff] %v1269
        %1782 = vst [vmem:[%s249 + $0x120] sm:$0xff] %v1270
        %1783 = vst [vmem:[%s249 + $0x128] sm:$0xff] %v1271
        %1784 = vst [vmem:[%s249 + $0x130] sm:$0xff] %v1272
        %1785 = vst [vmem:[%s249 + $0x138] sm:$0xff] %v1273
        %1786 = vst [vmem:[%s249 + $0x140] sm:$0xff] %v1274
        %1787 = vst [vmem:[%s249 + $0x148] sm:$0xff] %v1275
        %1788 = vst [vmem:[%s249 + $0x150] sm:$0xff] %v1276
        %1789 = vst [vmem:[%s249 + $0x158] sm:$0xff] %v1277
        %1790 = vst [vmem:[%s249 + $0x160] sm:$0xff] %v1278
        %1791 = vst [vmem:[%s249 + $0x168] sm:$0xff] %v1279
        %1792 = vst [vmem:[%s249 + $0x170] sm:$0xff] %v1280
        %1793 = vst [vmem:[%s249 + $0x178] sm:$0xff] %v1281
        %1794 = vst [vmem:[%s249 + $0x180] sm:$0xff] %v1282
        %1795 = vst [vmem:[%s249 + $0x188] sm:$0xff] %v1283
        %1796 = vst [vmem:[%s249 + $0x190] sm:$0xff] %v1284
        %1797 = vst [vmem:[%s249 + $0x198] sm:$0xff] %v1285
        %1798 = vst [vmem:[%s249 + $0x1a0] sm:$0xff] %v1286
        %1799 = vst [vmem:[%s249 + $0x1a8] sm:$0xff] %v1287
        %1800 = vst [vmem:[%s249 + $0x1b0] sm:$0xff] %v1288
        %1801 = vst [vmem:[%s249 + $0x1b8] sm:$0xff] %v1289
        %1802 = vst [vmem:[%s249 + $0x1c0] sm:$0xff] %v1290
        %1803 = vst [vmem:[%s249 + $0x1c8] sm:$0xff] %v1291
        %1804 = vst [vmem:[%s249 + $0x1d0] sm:$0xff] %v1292
        %1805 = vst [vmem:[%s249 + $0x1d8] sm:$0xff] %v1293
        %1806 = vst [vmem:[%s249 + $0x1e0] sm:$0xff] %v1294
        %1807 = vst [vmem:[%s249 + $0x1e8] sm:$0xff] %v1295
        %1808 = vst [vmem:[%s249 + $0x1f0] sm:$0xff] %v1296
        %1809 = vst [vmem:[%s249 + $0x1f8] sm:$0xff] %v1297
        %1810 = vst [vmem:[%s249 + $0x200] sm:$0xff] %v1298
        %1811 = vst [vmem:[%s249 + $0x208] sm:$0xff] %v1299
        %1812 = vst [vmem:[%s249 + $0x210] sm:$0xff] %v1300
        %1813 = vst [vmem:[%s249 + $0x218] sm:$0xff] %v1301
        %1814 = vst [vmem:[%s249 + $0x220] sm:$0xff] %v1302
        %1815 = vst [vmem:[%s249 + $0x228] sm:$0xff] %v1303
        %1816 = vst [vmem:[%s249 + $0x230] sm:$0xff] %v1304
        %1817 = vst [vmem:[%s249 + $0x238] sm:$0xff] %v1305
        %1818 = vst [vmem:[%s249 + $0x240] sm:$0xff] %v1306
        %1819 = vst [vmem:[%s249 + $0x248] sm:$0xff] %v1307
        %1820 = vst [vmem:[%s249 + $0x250] sm:$0xff] %v1308
        %1821 = vst [vmem:[%s249 + $0x258] sm:$0xff] %v1309
        %1822 = vst [vmem:[%s249 + $0x260] sm:$0xff] %v1310
        %1823 = vst [vmem:[%s249 + $0x268] sm:$0xff] %v1311
        %1824 = vst [vmem:[%s249 + $0x270] sm:$0xff] %v1312
        %1825 = vst [vmem:[%s249 + $0x278] sm:$0xff] %v1313
        %1826 = vst [vmem:[%s249 + $0x280] sm:$0xff] %v1314
        %1827 = vst [vmem:[%s249 + $0x288] sm:$0xff] %v1315
        %1828 = vst [vmem:[%s249 + $0x290] sm:$0xff] %v1316
        %1829 = vst [vmem:[%s249 + $0x298] sm:$0xff] %v1317
        %1830 = vst [vmem:[%s249 + $0x2a0] sm:$0xff] %v1318
        %1831 = vst [vmem:[%s249 + $0x2a8] sm:$0xff] %v1319
        %1832 = vst [vmem:[%s249 + $0x2b0] sm:$0xff] %v1320
        %1833 = vst [vmem:[%s249 + $0x2b8] sm:$0xff] %v1321
        %1834 = vst [vmem:[%s249 + $0x2c0] sm:$0xff] %v1322
        %1835 = vst [vmem:[%s249 + $0x2c8] sm:$0xff] %v1323
        %1836 = vst [vmem:[%s249 + $0x2d0] sm:$0xff] %v1324
        %1837 = vst [vmem:[%s249 + $0x2d8] sm:$0xff] %v1325
        %1838 = vst [vmem:[%s249 + $0x2e0] sm:$0xff] %v1326
        %1839 = vst [vmem:[%s249 + $0x2e8] sm:$0xff] %v1327
        %1840 = vst [vmem:[%s249 + $0x2f0] sm:$0xff] %v1328
        %1841 = vst [vmem:[%s249 + $0x2f8] sm:$0xff] %v1329
        %1842 = vst [vmem:[%s249 + $0x300] sm:$0xff] %v1330
        %1843 = vst [vmem:[%s249 + $0x308] sm:$0xff] %v1331
        %1844 = vst [vmem:[%s249 + $0x310] sm:$0xff] %v1332
        %1845 = vst [vmem:[%s249 + $0x318] sm:$0xff] %v1333
        %1846 = vst [vmem:[%s249 + $0x320] sm:$0xff] %v1334
        %1847 = vst [vmem:[%s249 + $0x328] sm:$0xff] %v1335
        %1848 = vst [vmem:[%s249 + $0x330] sm:$0xff] %v1336
        %1849 = vst [vmem:[%s249 + $0x338] sm:$0xff] %v1337
        %1850 = vst [vmem:[%s249 + $0x340] sm:$0xff] %v1338
        %1851 = vst [vmem:[%s249 + $0x348] sm:$0xff] %v1339
        %1852 = vst [vmem:[%s249 + $0x350] sm:$0xff] %v1340
        %1853 = vst [vmem:[%s249 + $0x358] sm:$0xff] %v1341
        %1854 = vst [vmem:[%s249 + $0x360] sm:$0xff] %v1342
        %1855 = vst [vmem:[%s249 + $0x368] sm:$0xff] %v1343
        %1856 = vst [vmem:[%s249 + $0x370] sm:$0xff] %v1344
        %1857 = vst [vmem:[%s249 + $0x378] sm:$0xff] %v1345
        %1858 = vst [vmem:[%s249 + $0x380] sm:$0xff] %v1346
        %1859 = vst [vmem:[%s249 + $0x388] sm:$0xff] %v1347
        %1860 = vst [vmem:[%s249 + $0x390] sm:$0xff] %v1348
        %1861 = vst [vmem:[%s249 + $0x398] sm:$0xff] %v1349
        %1862 = vst [vmem:[%s249 + $0x3a0] sm:$0xff] %v1350
        %1863 = vst [vmem:[%s249 + $0x3a8] sm:$0xff] %v1351
        %1864 = vst [vmem:[%s249 + $0x3b0] sm:$0xff] %v1352
        %1865 = vst [vmem:[%s249 + $0x3b8] sm:$0xff] %v1353
        %1866 = vst [vmem:[%s249 + $0x3c0] sm:$0xff] %v1354
        %1867 = vst [vmem:[%s249 + $0x3c8] sm:$0xff] %v1355
        %1868 = vst [vmem:[%s249 + $0x3d0] sm:$0xff] %v1356
        %1869 = vst [vmem:[%s249 + $0x3d8] sm:$0xff] %v1357
        %1870 = vst [vmem:[%s249 + $0x3e0] sm:$0xff] %v1358
        %1871 = vst [vmem:[%s249 + $0x3e8] sm:$0xff] %v1359
        %1872 = vst [vmem:[%s249 + $0x3f0] sm:$0xff] %v1360
        %1873 = vst [vmem:[%s249 + $0x3f8] sm:$0xff] %v1361
        %1874 = vst [vmem:[%s256] sm:$0xff] %v1618
        %1875 = vst [vmem:[%s256 + $0x8] sm:$0xff] %v1619
        %1876 = vst [vmem:[%s256 + $0x10] sm:$0xff] %v1620
        %1877 = vst [vmem:[%s256 + $0x18] sm:$0xff] %v1621
        %1878 = vst [vmem:[%s256 + $0x20] sm:$0xff] %v1622
        %1879 = vst [vmem:[%s256 + $0x28] sm:$0xff] %v1623
        %1880 = vst [vmem:[%s256 + $0x30] sm:$0xff] %v1624
        %1881 = vst [vmem:[%s256 + $0x38] sm:$0xff] %v1625
        %1882 = vst [vmem:[%s256 + $0x40] sm:$0xff] %v1626
        %1883 = vst [vmem:[%s256 + $0x48] sm:$0xff] %v1627
        %1884 = vst [vmem:[%s256 + $0x50] sm:$0xff] %v1628
        %1885 = vst [vmem:[%s256 + $0x58] sm:$0xff] %v1629
        %1886 = vst [vmem:[%s256 + $0x60] sm:$0xff] %v1630
        %1887 = vst [vmem:[%s256 + $0x68] sm:$0xff] %v1631
        %1888 = vst [vmem:[%s256 + $0x70] sm:$0xff] %v1632
        %1889 = vst [vmem:[%s256 + $0x78] sm:$0xff] %v1633
        %1890 = vst [vmem:[%s256 + $0x80] sm:$0xff] %v1634
        %1891 = vst [vmem:[%s256 + $0x88] sm:$0xff] %v1635
        %1892 = vst [vmem:[%s256 + $0x90] sm:$0xff] %v1636
        %1893 = vst [vmem:[%s256 + $0x98] sm:$0xff] %v1637
        %1894 = vst [vmem:[%s256 + $0xa0] sm:$0xff] %v1638
        %1895 = vst [vmem:[%s256 + $0xa8] sm:$0xff] %v1639
        %1896 = vst [vmem:[%s256 + $0xb0] sm:$0xff] %v1640
        %1897 = vst [vmem:[%s256 + $0xb8] sm:$0xff] %v1641
        %1898 = vst [vmem:[%s256 + $0xc0] sm:$0xff] %v1642
        %1899 = vst [vmem:[%s256 + $0xc8] sm:$0xff] %v1643
        %1900 = vst [vmem:[%s256 + $0xd0] sm:$0xff] %v1644
        %1901 = vst [vmem:[%s256 + $0xd8] sm:$0xff] %v1645
        %1902 = vst [vmem:[%s256 + $0xe0] sm:$0xff] %v1646
        %1903 = vst [vmem:[%s256 + $0xe8] sm:$0xff] %v1647
        %1904 = vst [vmem:[%s256 + $0xf0] sm:$0xff] %v1648
        %1905 = vst [vmem:[%s256 + $0xf8] sm:$0xff] %v1649
        %1906 = vst [vmem:[%s256 + $0x100] sm:$0xff] %v1650
        %1907 = vst [vmem:[%s256 + $0x108] sm:$0xff] %v1651
        %1908 = vst [vmem:[%s256 + $0x110] sm:$0xff] %v1652
        %1909 = vst [vmem:[%s256 + $0x118] sm:$0xff] %v1653
        %1910 = vst [vmem:[%s256 + $0x120] sm:$0xff] %v1654
        %1911 = vst [vmem:[%s256 + $0x128] sm:$0xff] %v1655
        %1912 = vst [vmem:[%s256 + $0x130] sm:$0xff] %v1656
        %1913 = vst [vmem:[%s256 + $0x138] sm:$0xff] %v1657
        %1914 = vst [vmem:[%s256 + $0x140] sm:$0xff] %v1658
        %1915 = vst [vmem:[%s256 + $0x148] sm:$0xff] %v1659
        %1916 = vst [vmem:[%s256 + $0x150] sm:$0xff] %v1660
        %1917 = vst [vmem:[%s256 + $0x158] sm:$0xff] %v1661
        %1918 = vst [vmem:[%s256 + $0x160] sm:$0xff] %v1662
        %1919 = vst [vmem:[%s256 + $0x168] sm:$0xff] %v1663
        %1920 = vst [vmem:[%s256 + $0x170] sm:$0xff] %v1664
        %1921 = vst [vmem:[%s256 + $0x178] sm:$0xff] %v1665
        %1922 = vst [vmem:[%s256 + $0x180] sm:$0xff] %v1666
        %1923 = vst [vmem:[%s256 + $0x188] sm:$0xff] %v1667
        %1924 = vst [vmem:[%s256 + $0x190] sm:$0xff] %v1668
        %1925 = vst [vmem:[%s256 + $0x198] sm:$0xff] %v1669
        %1926 = vst [vmem:[%s256 + $0x1a0] sm:$0xff] %v1670
        %1927 = vst [vmem:[%s256 + $0x1a8] sm:$0xff] %v1671
        %1928 = vst [vmem:[%s256 + $0x1b0] sm:$0xff] %v1672
        %1929 = vst [vmem:[%s256 + $0x1b8] sm:$0xff] %v1673
        %1930 = vst [vmem:[%s256 + $0x1c0] sm:$0xff] %v1674
        %1931 = vst [vmem:[%s256 + $0x1c8] sm:$0xff] %v1675
        %1932 = vst [vmem:[%s256 + $0x1d0] sm:$0xff] %v1676
        %1933 = vst [vmem:[%s256 + $0x1d8] sm:$0xff] %v1677
        %1934 = vst [vmem:[%s256 + $0x1e0] sm:$0xff] %v1678
        %1935 = vst [vmem:[%s256 + $0x1e8] sm:$0xff] %v1679
        %1936 = vst [vmem:[%s256 + $0x1f0] sm:$0xff] %v1680
        %1937 = vst [vmem:[%s256 + $0x1f8] sm:$0xff] %v1681
        %1938 = vst [vmem:[%s256 + $0x200] sm:$0xff] %v1682
        %1939 = vst [vmem:[%s256 + $0x208] sm:$0xff] %v1683
        %1940 = vst [vmem:[%s256 + $0x210] sm:$0xff] %v1684
        %1941 = vst [vmem:[%s256 + $0x218] sm:$0xff] %v1685
        %1942 = vst [vmem:[%s256 + $0x220] sm:$0xff] %v1686
        %1943 = vst [vmem:[%s256 + $0x228] sm:$0xff] %v1687
        %1944 = vst [vmem:[%s256 + $0x230] sm:$0xff] %v1688
        %1945 = vst [vmem:[%s256 + $0x238] sm:$0xff] %v1689
        %1946 = vst [vmem:[%s256 + $0x240] sm:$0xff] %v1690
        %1947 = vst [vmem:[%s256 + $0x248] sm:$0xff] %v1691
        %1948 = vst [vmem:[%s256 + $0x250] sm:$0xff] %v1692
        %1949 = vst [vmem:[%s256 + $0x258] sm:$0xff] %v1693
        %1950 = vst [vmem:[%s256 + $0x260] sm:$0xff] %v1694
        %1951 = vst [vmem:[%s256 + $0x268] sm:$0xff] %v1695
        %1952 = vst [vmem:[%s256 + $0x270] sm:$0xff] %v1696
        %1953 = vst [vmem:[%s256 + $0x278] sm:$0xff] %v1697
        %1954 = vst [vmem:[%s256 + $0x280] sm:$0xff] %v1698
        %1955 = vst [vmem:[%s256 + $0x288] sm:$0xff] %v1699
        %1956 = vst [vmem:[%s256 + $0x290] sm:$0xff] %v1700
        %1957 = vst [vmem:[%s256 + $0x298] sm:$0xff] %v1701
        %1958 = vst [vmem:[%s256 + $0x2a0] sm:$0xff] %v1702
        %1959 = vst [vmem:[%s256 + $0x2a8] sm:$0xff] %v1703
        %1960 = vst [vmem:[%s256 + $0x2b0] sm:$0xff] %v1704
        %1961 = vst [vmem:[%s256 + $0x2b8] sm:$0xff] %v1705
        %1962 = vst [vmem:[%s256 + $0x2c0] sm:$0xff] %v1706
        %1963 = vst [vmem:[%s256 + $0x2c8] sm:$0xff] %v1707
        %1964 = vst [vmem:[%s256 + $0x2d0] sm:$0xff] %v1708
        %1965 = vst [vmem:[%s256 + $0x2d8] sm:$0xff] %v1709
        %1966 = vst [vmem:[%s256 + $0x2e0] sm:$0xff] %v1710
        %1967 = vst [vmem:[%s256 + $0x2e8] sm:$0xff] %v1711
        %1968 = vst [vmem:[%s256 + $0x2f0] sm:$0xff] %v1712
        %1969 = vst [vmem:[%s256 + $0x2f8] sm:$0xff] %v1713
        %1970 = vst [vmem:[%s256 + $0x300] sm:$0xff] %v1714
        %1971 = vst [vmem:[%s256 + $0x308] sm:$0xff] %v1715
        %1972 = vst [vmem:[%s256 + $0x310] sm:$0xff] %v1716
        %1973 = vst [vmem:[%s256 + $0x318] sm:$0xff] %v1717
        %1974 = vst [vmem:[%s256 + $0x320] sm:$0xff] %v1718
        %1975 = vst [vmem:[%s256 + $0x328] sm:$0xff] %v1719
        %1976 = vst [vmem:[%s256 + $0x330] sm:$0xff] %v1720
        %1977 = vst [vmem:[%s256 + $0x338] sm:$0xff] %v1721
        %1978 = vst [vmem:[%s256 + $0x340] sm:$0xff] %v1722
        %1979 = vst [vmem:[%s256 + $0x348] sm:$0xff] %v1723
        %1980 = vst [vmem:[%s256 + $0x350] sm:$0xff] %v1724
        %1981 = vst [vmem:[%s256 + $0x358] sm:$0xff] %v1725
        %1982 = vst [vmem:[%s256 + $0x360] sm:$0xff] %v1726
        %1983 = vst [vmem:[%s256 + $0x368] sm:$0xff] %v1727
        %1984 = vst [vmem:[%s256 + $0x370] sm:$0xff] %v1728
        %1985 = vst [vmem:[%s256 + $0x378] sm:$0xff] %v1729
        %1986 = vst [vmem:[%s256 + $0x380] sm:$0xff] %v1730
        %1987 = vst [vmem:[%s256 + $0x388] sm:$0xff] %v1731
        %1988 = vst [vmem:[%s256 + $0x390] sm:$0xff] %v1732
        %1989 = vst [vmem:[%s256 + $0x398] sm:$0xff] %v1733
        %1990 = vst [vmem:[%s256 + $0x3a0] sm:$0xff] %v1734
        %1991 = vst [vmem:[%s256 + $0x3a8] sm:$0xff] %v1735
        %1992 = vst [vmem:[%s256 + $0x3b0] sm:$0xff] %v1736
        %1993 = vst [vmem:[%s256 + $0x3b8] sm:$0xff] %v1737
        %1994 = vst [vmem:[%s256 + $0x3c0] sm:$0xff] %v1738
        %1995 = vst [vmem:[%s256 + $0x3c8] sm:$0xff] %v1739
        %1996 = vst [vmem:[%s256 + $0x3d0] sm:$0xff] %v1740
        %1997 = vst [vmem:[%s256 + $0x3d8] sm:$0xff] %v1741
        %1998 = vst [vmem:[%s256 + $0x3e0] sm:$0xff] %v1742
        %1999 = vst [vmem:[%s256 + $0x3e8] sm:$0xff] %v1743
        %2000 = vst [vmem:[%s256 + $0x3f0] sm:$0xff] %v1744
        %2001 = vst [vmem:[%s256 + $0x3f8] sm:$0xff] %v1745
        %v2002 = vadd.f32 %v1234, %v1618
        %v2003 = vadd.f32 %v1235, %v1619
        %v2004 = vadd.f32 %v1236, %v1620
        %v2005 = vadd.f32 %v1237, %v1621
        %v2006 = vadd.f32 %v1238, %v1622
        %v2007 = vadd.f32 %v1239, %v1623
        %v2008 = vadd.f32 %v1240, %v1624
        %v2009 = vadd.f32 %v1241, %v1625
        %v2010 = vadd.f32 %v1242, %v1626
        %v2011 = vadd.f32 %v1243, %v1627
        %v2012 = vadd.f32 %v1244, %v1628
        %v2013 = vadd.f32 %v1245, %v1629
        %v2014 = vadd.f32 %v1246, %v1630
        %v2015 = vadd.f32 %v1247, %v1631
        %v2016 = vadd.f32 %v1248, %v1632
        %v2017 = vadd.f32 %v1249, %v1633
        %v2018 = vadd.f32 %v1250, %v1634
        %v2019 = vadd.f32 %v1251, %v1635
        %v2020 = vadd.f32 %v1252, %v1636
        %v2021 = vadd.f32 %v1253, %v1637
        %v2022 = vadd.f32 %v1254, %v1638
        %v2023 = vadd.f32 %v1255, %v1639
        %v2024 = vadd.f32 %v1256, %v1640
        %v2025 = vadd.f32 %v1257, %v1641
        %v2026 = vadd.f32 %v1258, %v1642
        %v2027 = vadd.f32 %v1259, %v1643
        %v2028 = vadd.f32 %v1260, %v1644
        %v2029 = vadd.f32 %v1261, %v1645
        %v2030 = vadd.f32 %v1262, %v1646
        %v2031 = vadd.f32 %v1263, %v1647
        %v2032 = vadd.f32 %v1264, %v1648
        %v2033 = vadd.f32 %v1265, %v1649
        %v2034 = vadd.f32 %v1266, %v1650
        %v2035 = vadd.f32 %v1267, %v1651
        %v2036 = vadd.f32 %v1268, %v1652
        %v2037 = vadd.f32 %v1269, %v1653
        %v2038 = vadd.f32 %v1270, %v1654
        %v2039 = vadd.f32 %v1271, %v1655
        %v2040 = vadd.f32 %v1272, %v1656
        %v2041 = vadd.f32 %v1273, %v1657
        %v2042 = vadd.f32 %v1274, %v1658
        %v2043 = vadd.f32 %v1275, %v1659
        %v2044 = vadd.f32 %v1276, %v1660
        %v2045 = vadd.f32 %v1277, %v1661
        %v2046 = vadd.f32 %v1278, %v1662
        %v2047 = vadd.f32 %v1279, %v1663
        %v2048 = vadd.f32 %v1280, %v1664
        %v2049 = vadd.f32 %v1281, %v1665
        %v2050 = vadd.f32 %v1282, %v1666
        %v2051 = vadd.f32 %v1283, %v1667
        %v2052 = vadd.f32 %v1284, %v1668
        %v2053 = vadd.f32 %v1285, %v1669
        %v2054 = vadd.f32 %v1286, %v1670
        %v2055 = vadd.f32 %v1287, %v1671
        %v2056 = vadd.f32 %v1288, %v1672
        %v2057 = vadd.f32 %v1289, %v1673
        %v2058 = vadd.f32 %v1290, %v1674
        %v2059 = vadd.f32 %v1291, %v1675
        %v2060 = vadd.f32 %v1292, %v1676
        %v2061 = vadd.f32 %v1293, %v1677
        %v2062 = vadd.f32 %v1294, %v1678
        %v2063 = vadd.f32 %v1295, %v1679
        %v2064 = vadd.f32 %v1296, %v1680
        %v2065 = vadd.f32 %v1297, %v1681
        %v2066 = vadd.f32 %v1298, %v1682
        %v2067 = vadd.f32 %v1299, %v1683
        %v2068 = vadd.f32 %v1300, %v1684
        %v2069 = vadd.f32 %v1301, %v1685
        %v2070 = vadd.f32 %v1302, %v1686
        %v2071 = vadd.f32 %v1303, %v1687
        %v2072 = vadd.f32 %v1304, %v1688
        %v2073 = vadd.f32 %v1305, %v1689
        %v2074 = vadd.f32 %v1306, %v1690
        %v2075 = vadd.f32 %v1307, %v1691
        %v2076 = vadd.f32 %v1308, %v1692
        %v2077 = vadd.f32 %v1309, %v1693
        %v2078 = vadd.f32 %v1310, %v1694
        %v2079 = vadd.f32 %v1311, %v1695
        %v2080 = vadd.f32 %v1312, %v1696
        %v2081 = vadd.f32 %v1313, %v1697
        %v2082 = vadd.f32 %v1314, %v1698
        %v2083 = vadd.f32 %v1315, %v1699
        %v2084 = vadd.f32 %v1316, %v1700
        %v2085 = vadd.f32 %v1317, %v1701
        %v2086 = vadd.f32 %v1318, %v1702
        %v2087 = vadd.f32 %v1319, %v1703
        %v2088 = vadd.f32 %v1320, %v1704
        %v2089 = vadd.f32 %v1321, %v1705
        %v2090 = vadd.f32 %v1322, %v1706
        %v2091 = vadd.f32 %v1323, %v1707
        %v2092 = vadd.f32 %v1324, %v1708
        %v2093 = vadd.f32 %v1325, %v1709
        %v2094 = vadd.f32 %v1326, %v1710
        %v2095 = vadd.f32 %v1327, %v1711
        %v2096 = vadd.f32 %v1328, %v1712
        %v2097 = vadd.f32 %v1329, %v1713
        %v2098 = vadd.f32 %v1330, %v1714
        %v2099 = vadd.f32 %v1331, %v1715
        %v2100 = vadd.f32 %v1332, %v1716
        %v2101 = vadd.f32 %v1333, %v1717
        %v2102 = vadd.f32 %v1334, %v1718
        %v2103 = vadd.f32 %v1335, %v1719
        %v2104 = vadd.f32 %v1336, %v1720
        %v2105 = vadd.f32 %v1337, %v1721
        %v2106 = vadd.f32 %v1338, %v1722
        %v2107 = vadd.f32 %v1339, %v1723
        %v2108 = vadd.f32 %v1340, %v1724
        %v2109 = vadd.f32 %v1341, %v1725
        %v2110 = vadd.f32 %v1342, %v1726
        %v2111 = vadd.f32 %v1343, %v1727
        %v2112 = vadd.f32 %v1344, %v1728
        %v2113 = vadd.f32 %v1345, %v1729
        %v2114 = vadd.f32 %v1346, %v1730
        %v2115 = vadd.f32 %v1347, %v1731
        %v2116 = vadd.f32 %v1348, %v1732
        %v2117 = vadd.f32 %v1349, %v1733
        %v2118 = vadd.f32 %v1350, %v1734
        %v2119 = vadd.f32 %v1351, %v1735
        %v2120 = vadd.f32 %v1352, %v1736
        %v2121 = vadd.f32 %v1353, %v1737
        %v2122 = vadd.f32 %v1354, %v1738
        %v2123 = vadd.f32 %v1355, %v1739
        %v2124 = vadd.f32 %v1356, %v1740
        %v2125 = vadd.f32 %v1357, %v1741
        %v2126 = vadd.f32 %v1358, %v1742
        %v2127 = vadd.f32 %v1359, %v1743
        %v2128 = vadd.f32 %v1360, %v1744
        %v2129 = vadd.f32 %v1361, %v1745
        %2130 = vst [vmem:[%s263] sm:$0xff] %v2002
        %2131 = vst [vmem:[%s263 + $0x8] sm:$0xff] %v2003
        %2132 = vst [vmem:[%s263 + $0x10] sm:$0xff] %v2004
        %2133 = vst [vmem:[%s263 + $0x18] sm:$0xff] %v2005
        %2134 = vst [vmem:[%s263 + $0x20] sm:$0xff] %v2006
        %2135 = vst [vmem:[%s263 + $0x28] sm:$0xff] %v2007
        %2136 = vst [vmem:[%s263 + $0x30] sm:$0xff] %v2008
        %2137 = vst [vmem:[%s263 + $0x38] sm:$0xff] %v2009
        %2138 = vst [vmem:[%s263 + $0x40] sm:$0xff] %v2010
        %2139 = vst [vmem:[%s263 + $0x48] sm:$0xff] %v2011
        %2140 = vst [vmem:[%s263 + $0x50] sm:$0xff] %v2012
        %2141 = vst [vmem:[%s263 + $0x58] sm:$0xff] %v2013
        %2142 = vst [vmem:[%s263 + $0x60] sm:$0xff] %v2014
        %2143 = vst [vmem:[%s263 + $0x68] sm:$0xff] %v2015
        %2144 = vst [vmem:[%s263 + $0x70] sm:$0xff] %v2016
        %2145 = vst [vmem:[%s263 + $0x78] sm:$0xff] %v2017
        %2146 = vst [vmem:[%s263 + $0x80] sm:$0xff] %v2018
        %2147 = vst [vmem:[%s263 + $0x88] sm:$0xff] %v2019
        %2148 = vst [vmem:[%s263 + $0x90] sm:$0xff] %v2020
        %2149 = vst [vmem:[%s263 + $0x98] sm:$0xff] %v2021
        %2150 = vst [vmem:[%s263 + $0xa0] sm:$0xff] %v2022
        %2151 = vst [vmem:[%s263 + $0xa8] sm:$0xff] %v2023
        %2152 = vst [vmem:[%s263 + $0xb0] sm:$0xff] %v2024
        %2153 = vst [vmem:[%s263 + $0xb8] sm:$0xff] %v2025
        %2154 = vst [vmem:[%s263 + $0xc0] sm:$0xff] %v2026
        %2155 = vst [vmem:[%s263 + $0xc8] sm:$0xff] %v2027
        %2156 = vst [vmem:[%s263 + $0xd0] sm:$0xff] %v2028
        %2157 = vst [vmem:[%s263 + $0xd8] sm:$0xff] %v2029
        %2158 = vst [vmem:[%s263 + $0xe0] sm:$0xff] %v2030
        %2159 = vst [vmem:[%s263 + $0xe8] sm:$0xff] %v2031
        %2160 = vst [vmem:[%s263 + $0xf0] sm:$0xff] %v2032
        %2161 = vst [vmem:[%s263 + $0xf8] sm:$0xff] %v2033
        %2162 = vst [vmem:[%s263 + $0x100] sm:$0xff] %v2034
        %2163 = vst [vmem:[%s263 + $0x108] sm:$0xff] %v2035
        %2164 = vst [vmem:[%s263 + $0x110] sm:$0xff] %v2036
        %2165 = vst [vmem:[%s263 + $0x118] sm:$0xff] %v2037
        %2166 = vst [vmem:[%s263 + $0x120] sm:$0xff] %v2038
        %2167 = vst [vmem:[%s263 + $0x128] sm:$0xff] %v2039
        %2168 = vst [vmem:[%s263 + $0x130] sm:$0xff] %v2040
        %2169 = vst [vmem:[%s263 + $0x138] sm:$0xff] %v2041
        %2170 = vst [vmem:[%s263 + $0x140] sm:$0xff] %v2042
        %2171 = vst [vmem:[%s263 + $0x148] sm:$0xff] %v2043
        %2172 = vst [vmem:[%s263 + $0x150] sm:$0xff] %v2044
        %2173 = vst [vmem:[%s263 + $0x158] sm:$0xff] %v2045
        %2174 = vst [vmem:[%s263 + $0x160] sm:$0xff] %v2046
        %2175 = vst [vmem:[%s263 + $0x168] sm:$0xff] %v2047
        %2176 = vst [vmem:[%s263 + $0x170] sm:$0xff] %v2048
        %2177 = vst [vmem:[%s263 + $0x178] sm:$0xff] %v2049
        %2178 = vst [vmem:[%s263 + $0x180] sm:$0xff] %v2050
        %2179 = vst [vmem:[%s263 + $0x188] sm:$0xff] %v2051
        %2180 = vst [vmem:[%s263 + $0x190] sm:$0xff] %v2052
        %2181 = vst [vmem:[%s263 + $0x198] sm:$0xff] %v2053
        %2182 = vst [vmem:[%s263 + $0x1a0] sm:$0xff] %v2054
        %2183 = vst [vmem:[%s263 + $0x1a8] sm:$0xff] %v2055
        %2184 = vst [vmem:[%s263 + $0x1b0] sm:$0xff] %v2056
        %2185 = vst [vmem:[%s263 + $0x1b8] sm:$0xff] %v2057
        %2186 = vst [vmem:[%s263 + $0x1c0] sm:$0xff] %v2058
        %2187 = vst [vmem:[%s263 + $0x1c8] sm:$0xff] %v2059
        %2188 = vst [vmem:[%s263 + $0x1d0] sm:$0xff] %v2060
        %2189 = vst [vmem:[%s263 + $0x1d8] sm:$0xff] %v2061
        %2190 = vst [vmem:[%s263 + $0x1e0] sm:$0xff] %v2062
        %2191 = vst [vmem:[%s263 + $0x1e8] sm:$0xff] %v2063
        %2192 = vst [vmem:[%s263 + $0x1f0] sm:$0xff] %v2064
        %2193 = vst [vmem:[%s263 + $0x1f8] sm:$0xff] %v2065
        %2194 = vst [vmem:[%s263 + $0x200] sm:$0xff] %v2066
        %2195 = vst [vmem:[%s263 + $0x208] sm:$0xff] %v2067
        %2196 = vst [vmem:[%s263 + $0x210] sm:$0xff] %v2068
        %2197 = vst [vmem:[%s263 + $0x218] sm:$0xff] %v2069
        %2198 = vst [vmem:[%s263 + $0x220] sm:$0xff] %v2070
        %2199 = vst [vmem:[%s263 + $0x228] sm:$0xff] %v2071
        %2200 = vst [vmem:[%s263 + $0x230] sm:$0xff] %v2072
        %2201 = vst [vmem:[%s263 + $0x238] sm:$0xff] %v2073
        %2202 = vst [vmem:[%s263 + $0x240] sm:$0xff] %v2074
        %2203 = vst [vmem:[%s263 + $0x248] sm:$0xff] %v2075
        %2204 = vst [vmem:[%s263 + $0x250] sm:$0xff] %v2076
        %2205 = vst [vmem:[%s263 + $0x258] sm:$0xff] %v2077
        %2206 = vst [vmem:[%s263 + $0x260] sm:$0xff] %v2078
        %2207 = vst [vmem:[%s263 + $0x268] sm:$0xff] %v2079
        %2208 = vst [vmem:[%s263 + $0x270] sm:$0xff] %v2080
        %2209 = vst [vmem:[%s263 + $0x278] sm:$0xff] %v2081
        %2210 = vst [vmem:[%s263 + $0x280] sm:$0xff] %v2082
        %2211 = vst [vmem:[%s263 + $0x288] sm:$0xff] %v2083
        %2212 = vst [vmem:[%s263 + $0x290] sm:$0xff] %v2084
        %2213 = vst [vmem:[%s263 + $0x298] sm:$0xff] %v2085
        %2214 = vst [vmem:[%s263 + $0x2a0] sm:$0xff] %v2086
        %2215 = vst [vmem:[%s263 + $0x2a8] sm:$0xff] %v2087
        %2216 = vst [vmem:[%s263 + $0x2b0] sm:$0xff] %v2088
        %2217 = vst [vmem:[%s263 + $0x2b8] sm:$0xff] %v2089
        %2218 = vst [vmem:[%s263 + $0x2c0] sm:$0xff] %v2090
        %2219 = vst [vmem:[%s263 + $0x2c8] sm:$0xff] %v2091
        %2220 = vst [vmem:[%s263 + $0x2d0] sm:$0xff] %v2092
        %2221 = vst [vmem:[%s263 + $0x2d8] sm:$0xff] %v2093
        %2222 = vst [vmem:[%s263 + $0x2e0] sm:$0xff] %v2094
        %2223 = vst [vmem:[%s263 + $0x2e8] sm:$0xff] %v2095
        %2224 = vst [vmem:[%s263 + $0x2f0] sm:$0xff] %v2096
        %2225 = vst [vmem:[%s263 + $0x2f8] sm:$0xff] %v2097
        %2226 = vst [vmem:[%s263 + $0x300] sm:$0xff] %v2098
        %2227 = vst [vmem:[%s263 + $0x308] sm:$0xff] %v2099
        %2228 = vst [vmem:[%s263 + $0x310] sm:$0xff] %v2100
        %2229 = vst [vmem:[%s263 + $0x318] sm:$0xff] %v2101
        %2230 = vst [vmem:[%s263 + $0x320] sm:$0xff] %v2102
        %2231 = vst [vmem:[%s263 + $0x328] sm:$0xff] %v2103
        %2232 = vst [vmem:[%s263 + $0x330] sm:$0xff] %v2104
        %2233 = vst [vmem:[%s263 + $0x338] sm:$0xff] %v2105
        %2234 = vst [vmem:[%s263 + $0x340] sm:$0xff] %v2106
        %2235 = vst [vmem:[%s263 + $0x348] sm:$0xff] %v2107
        %2236 = vst [vmem:[%s263 + $0x350] sm:$0xff] %v2108
        %2237 = vst [vmem:[%s263 + $0x358] sm:$0xff] %v2109
        %2238 = vst [vmem:[%s263 + $0x360] sm:$0xff] %v2110
        %2239 = vst [vmem:[%s263 + $0x368] sm:$0xff] %v2111
        %2240 = vst [vmem:[%s263 + $0x370] sm:$0xff] %v2112
        %2241 = vst [vmem:[%s263 + $0x378] sm:$0xff] %v2113
        %2242 = vst [vmem:[%s263 + $0x380] sm:$0xff] %v2114
        %2243 = vst [vmem:[%s263 + $0x388] sm:$0xff] %v2115
        %2244 = vst [vmem:[%s263 + $0x390] sm:$0xff] %v2116
        %2245 = vst [vmem:[%s263 + $0x398] sm:$0xff] %v2117
        %2246 = vst [vmem:[%s263 + $0x3a0] sm:$0xff] %v2118
        %2247 = vst [vmem:[%s263 + $0x3a8] sm:$0xff] %v2119
        %2248 = vst [vmem:[%s263 + $0x3b0] sm:$0xff] %v2120
        %2249 = vst [vmem:[%s263 + $0x3b8] sm:$0xff] %v2121
        %2250 = vst [vmem:[%s263 + $0x3c0] sm:$0xff] %v2122
        %2251 = vst [vmem:[%s263 + $0x3c8] sm:$0xff] %v2123
        %2252 = vst [vmem:[%s263 + $0x3d0] sm:$0xff] %v2124
        %2253 = vst [vmem:[%s263 + $0x3d8] sm:$0xff] %v2125
        %2254 = vst [vmem:[%s263 + $0x3e0] sm:$0xff] %v2126
        %2255 = vst [vmem:[%s263 + $0x3e8] sm:$0xff] %v2127
        %2256 = vst [vmem:[%s263 + $0x3f0] sm:$0xff] %v2128
        %2257 = vst [vmem:[%s263 + $0x3f8] sm:$0xff] %v2129
        %s2258 = sand.u32 %s102, 1
        %s2259 = scalar_lea.sflag [#allocation4], %s2258
        %s2260 = sand.u32 %s102, 1
        %s2261 = smul.addr %s2260, 1024
        %s2262 = scalar_lea.vmem [#allocation5], %s2261
        %s2263 = sand.u32 %s26, 1
        %s2264 = scalar_lea.sflag [#allocation7], %s2263
        %s2265 = sand.u32 %s128, 1
        %s2266 = smul.addr %s2265, 1024
        %s2267 = scalar_lea.vmem [#allocation6], %s2266
        %s2268 = sand.u32 %s26, 1
        %s2269 = scalar_lea.sflag [#allocation7], %s2268
        %s2270 = sand.u32 %s154, 1
        %s2271 = smul.addr %s2270, 1024
        %s2272 = scalar_lea.vmem [#allocation8], %s2271
        // Predicated region
        $region37: #{tpu_custom_call.1} parent=31 // pred_check
          %p2273 = pneg %p112
        $region38: #{tpu_custom_call.1} parent=31 // pred_check_branch
          %2275 = sbr.rel (%p2273) target = $region40
        $region39: #{tpu_custom_call.1} parent=31 // pred_region
          %s2276 = smul.u32 64, %s26
          %2278 = vsyncadd %s2259, 0
          %s2279 = smul.addr %s2276, 2
          %s2280 = smul.addr %s2279, 8
          %s2281 = scalar_lea.hbm %s3, %s2280
          %s2282 = sshll.u32 %s2262, 4
          %s2283 = int_to_ptr.vmem [resolvable:$true] %s2282
          %s2284 = sshll.u32 %s2281, 4
          %s2285 = int_to_ptr.hbm [resolvable:$true] %s2284
          %2290 = dma.vmem_to_hbm [thread:$0]  %s2283, 16384, %s2285, %s2259, 256, 256, 16
        $region40: #{tpu_custom_call.1} parent=31 // pred_fallthru
          _
        // Predicated region
        $region41: #{tpu_custom_call.1} parent=31 // pred_check
          %p2291 = pneg %p138
        $region42: #{tpu_custom_call.1} parent=31 // pred_check_branch
          %2293 = sbr.rel (%p2291) target = $region44
        $region43: #{tpu_custom_call.1} parent=31 // pred_region
          %s2294 = smul.u32 64, %s26
          %2296 = vsyncadd %s2264, 0
          %s2297 = smul.addr %s2294, 2
          %s2298 = smul.addr %s2297, 8
          %s2299 = scalar_lea.hbm %s4, %s2298
          %s2300 = sshll.u32 %s2267, 4
          %s2301 = int_to_ptr.vmem [resolvable:$true] %s2300
          %s2302 = sshll.u32 %s2299, 4
          %s2303 = int_to_ptr.hbm [resolvable:$true] %s2302
          %2308 = dma.vmem_to_hbm [thread:$0]  %s2301, 16384, %s2303, %s2264, 256, 256, 16
        $region44: #{tpu_custom_call.1} parent=31 // pred_fallthru
          _
        // Predicated region
        $region45: #{tpu_custom_call.1} parent=31 // pred_check
          %p2309 = pneg %p164
        $region46: #{tpu_custom_call.1} parent=31 // pred_check_branch
          %2311 = sbr.rel (%p2309) target = $region48
        $region47: #{tpu_custom_call.1} parent=31 // pred_region
          %s2312 = smul.u32 64, %s26
          %2314 = vsyncadd %s2269, 0
          %s2315 = smul.addr %s2312, 2
          %s2316 = smul.addr %s2315, 8
          %s2317 = scalar_lea.hbm %s5, %s2316
          %s2318 = sshll.u32 %s2272, 4
          %s2319 = int_to_ptr.vmem [resolvable:$true] %s2318
          %s2320 = sshll.u32 %s2317, 4
          %s2321 = int_to_ptr.hbm [resolvable:$true] %s2320
          %2326 = dma.vmem_to_hbm [thread:$0]  %s2319, 16384, %s2321, %s2269, 256, 256, 16
        $region48: #{tpu_custom_call.1} parent=31 // pred_fallthru
          _
      $region32: #{tpu_custom_call.1} parent=5 // pred_fallthru
        _
      %p2327 = scmp.le.s32.totalorder 2, %s21
      // Predicated region
      $region49: #{tpu_custom_call.1} parent=5 // pred_check
        %p2328 = pneg %p2327
      $region50: #{tpu_custom_call.1} parent=5 // pred_check_branch
        %2330 = sbr.rel (%p2328) target = $region52
      $region51: #{tpu_custom_call.1} parent=5 // pred_region
        %s2331 = ssub.s32 %s21, 2
        // Predicated region
        $region53: #{tpu_custom_call.1} parent=51 // pred_check
          %p2332 = pneg %p118
        $region54: #{tpu_custom_call.1} parent=51 // pred_check_branch
          %2334 = sbr.rel (%p2332) target = $region56
        $region55: #{tpu_custom_call.1} parent=51 // pred_region
          %s2335 = sand.u32 %s103, 1
          %s2336 = scalar_lea.sflag [#allocation4], %s2335
          %s2337 = sand.u32 %s103, 1
          %s2338 = smul.addr %s2337, 1024
          %s2339 = scalar_lea.vmem [#allocation5], %s2338
          %2341 = dma.done %s2336, 16384
        $region56: #{tpu_custom_call.1} parent=51 // pred_fallthru
          _
        // Predicated region
        $region57: #{tpu_custom_call.1} parent=51 // pred_check
          %p2342 = pneg %p144
        $region58: #{tpu_custom_call.1} parent=51 // pred_check_branch
          %2344 = sbr.rel (%p2342) target = $region60
        $region59: #{tpu_custom_call.1} parent=51 // pred_region
          %s2345 = sand.u32 %s27, 1
          %s2346 = scalar_lea.sflag [#allocation7], %s2345
          %s2347 = sand.u32 %s129, 1
          %s2348 = smul.addr %s2347, 1024
          %s2349 = scalar_lea.vmem [#allocation6], %s2348
          %2351 = dma.done %s2346, 16384
        $region60: #{tpu_custom_call.1} parent=51 // pred_fallthru
          _
        // Predicated region
        $region61: #{tpu_custom_call.1} parent=51 // pred_check
          %p2352 = pneg %p170
        $region62: #{tpu_custom_call.1} parent=51 // pred_check_branch
          %2354 = sbr.rel (%p2352) target = $region64
        $region63: #{tpu_custom_call.1} parent=51 // pred_region
          %s2355 = sand.u32 %s27, 1
          %s2356 = scalar_lea.sflag [#allocation7], %s2355
          %s2357 = sand.u32 %s155, 1
          %s2358 = smul.addr %s2357, 1024
          %s2359 = scalar_lea.vmem [#allocation8], %s2358
          %2361 = dma.done %s2356, 16384
        $region64: #{tpu_custom_call.1} parent=51 // pred_fallthru
          _
      $region52: #{tpu_custom_call.1} parent=5 // pred_fallthru
        _
    $region6: #{tpu_custom_call.1} parent=1 // loop_footer
      %s25 = sadd.s32 1, %s21
    $region7: #{tpu_custom_call.1} parent=1 // loop_footer_branch
      %20 = sbr.rel target = $region3
    $region8: #{tpu_custom_call.1} parent=1 // loop_exit
      _
    %2362 = vsyncpa [#allocation3], 1
    %s2363 = scalar_lea.sflag [#allocation3], 1
    %2364 = vsyncpa %s2363, 1
    %2365 = vsyncpa [#allocation4], 1
    %s2366 = scalar_lea.sflag [#allocation4], 1
    %2367 = vsyncpa %s2366, 1
    %2368 = vsyncpa [#allocation7], 1
    %s2369 = scalar_lea.sflag [#allocation7], 1
    %2370 = vsyncpa %s2369, 1

</llo_original>
